<compile_context>
chip_gen: v6e
topology: v6e:2x2x1
jax: 0.10.0
libtpu: 0.0.40
codegen_flags: <defaults>
</compile_context>

<pallas_src>
import functools

import jax
import jax.numpy as jnp
from jax.experimental import pallas as pl
from jax.experimental.pallas import tpu as pltpu

LANE = 128  # TPU lane width; keep the channel (last) dim a multiple of this.


# ------------------------------ small helpers --------------------------------

def _round_up(x, m):
    return (x + m - 1) // m * m


def _pick_h_tile(h, w, cp_in, cp_out, in_itemsize, budget_bytes=4 * 1024 * 1024):
    """Largest divisor of H whose per-step conv working set stays under budget."""
    best = 1
    for th in range(1, h + 1):
        if h % th:
            continue
        footprint = ((th + 2) * (w + 2) * cp_in * in_itemsize  # halo'd input block
                     + 2 * th * w * cp_out * 4)                # f32 acc + conv block
        if footprint <= budget_bytes:
            best = th
    return best


def _pick_row_tile(m, cap=2048):
    """Largest divisor of M that is <= cap and a multiple of 8 (or M itself)."""
    if m <= cap:
        return m
    for t in range(cap, 0, -1):
        if m % t == 0 and t % 8 == 0:
            return t
    return m


def _vmem_limit(block_bytes):
    # ~2x double-buffered blocks + headroom, capped at 64 MiB (v7x physical VMEM).
    return int(min(64 * 1024 * 1024, max(16 * 1024 * 1024, 4 * block_bytes)))


# ------------------------------ Pallas kernels --------------------------------

def _conv3x3_stats_kernel(x_ref, w_ref, conv_ref, sum_ref, ssq_ref, *, th, tw):
    """3x3 SAME conv on a halo'd row tile + per-channel sum / sum-of-squares.

    x_ref   : (1, th+2, tw+2, Cin_p)  compute-dtype halo'd input chunk
    w_ref   : (9, Cin_p, Cout_p)      compute-dtype weights (ky*3+kx), resident
    conv_ref: (1, th, tw, Cout_p)     f32 raw (pre-BN) conv output
    sum_ref : (1, 8, Cout_p)          f32 per-tile sum(x)   (8 identical rows)
    ssq_ref : (1, 8, Cout_p)          f32 per-tile sum(x^2) (8 identical rows)
    """
    cp_out = conv_ref.shape[-1]
    m = th * tw
    xt = x_ref[0]                                    # (th+2, tw+2, Cin_p)
    acc = jnp.zeros((m, cp_out), jnp.float32)
    for ky in range(3):
        for kx in range(3):
            patch = xt[ky:ky + th, kx:kx + tw, :]    # (th, tw, Cin_p)
            patch = patch.reshape(m, patch.shape[-1])
            acc = acc + jnp.dot(patch, w_ref[ky * 3 + kx],
                                preferred_element_type=jnp.float32)
    conv_ref[0] = acc.reshape(th, tw, cp_out)
    # Per-channel (column) reduction on the MXU instead of a cross-sublane XLU
    # reduce; the 8 output rows are identical and collapsed later in plain JAX.
    ones = jnp.ones((8, m), jnp.float32)
    sum_ref[0] = jnp.dot(ones, acc, preferred_element_type=jnp.float32)
    ssq_ref[0] = jnp.dot(ones, acc * acc, preferred_element_type=jnp.float32)


def _affine_relu_kernel(x_ref, p_ref, o_ref):
    """y = max(x * scale + shift, 0) with folded per-channel scale/shift.

    x_ref: (tm, C_p) f32 raw conv tile
    p_ref: (2, C_p)  f32 — row 0 = scale, row 1 = shift (resident)
    o_ref: (tm, C_p) output dtype
    """
    p = p_ref[...]
    y = x_ref[...] * p[0:1, :] + p[1:2, :]
    o_ref[...] = jnp.maximum(y, 0.0).astype(o_ref.dtype)


# ------------------------------ stage wrappers --------------------------------

def _conv3x3_raw(x_nhwc, w9, *, row_tile=None):
    """3x3 SAME conv (no bias) over channel-padded NHWC.

    Returns (conv f32 (N,H,W,Cout_p), per-channel sum (Cout_p,), sumsq (Cout_p,)).
    """
    n, h, w, cp_in = x_nhwc.shape
    cp_out = w9.shape[-1]
    itemsize = jnp.dtype(x_nhwc.dtype).itemsize

    th = row_tile if (row_tile and h % row_tile == 0) else _pick_h_tile(
        h, w, cp_in, cp_out, itemsize)
    nb = h // th

    # Layout plumbing (plain JAX): zero-pad spatially and stack overlapping
    # (th+2)-row halo chunks so the kernel only sees plain Blocked tiles.
    xp = jnp.pad(x_nhwc, ((0, 0), (1, 1), (1, 1), (0, 0)))
    chunks = jnp.stack([xp[:, i * th:i * th + th + 2] for i in range(nb)], axis=1)
    chunks = chunks.reshape(n * nb, th + 2, w + 2, cp_in)

    block_bytes = ((th + 2) * (w + 2) * cp_in * itemsize
                   + 2 * th * w * cp_out * 4
                   + 9 * cp_in * cp_out * itemsize
                   + 2 * 8 * cp_out * 4)

    kernel = functools.partial(_conv3x3_stats_kernel, th=th, tw=w)
    conv, sums, ssqs = pl.pallas_call(
        kernel,
        grid=(n * nb,),
        in_specs=[
            pl.BlockSpec((1, th + 2, w + 2, cp_in), lambda t: (t, 0, 0, 0)),
            pl.BlockSpec((9, cp_in, cp_out), lambda t: (0, 0, 0)),      # resident
        ],
        out_specs=[
            pl.BlockSpec((1, th, w, cp_out), lambda t: (t, 0, 0, 0)),
            pl.BlockSpec((1, 8, cp_out), lambda t: (t, 0, 0)),
            pl.BlockSpec((1, 8, cp_out), lambda t: (t, 0, 0)),
        ],
        out_shape=[
            jax.ShapeDtypeStruct((n * nb, th, w, cp_out), jnp.float32),
            jax.ShapeDtypeStruct((n * nb, 8, cp_out), jnp.float32),
            jax.ShapeDtypeStruct((n * nb, 8, cp_out), jnp.float32),
        ],
        compiler_params=pltpu.CompilerParams(
            dimension_semantics=("parallel",),
            vmem_limit_bytes=_vmem_limit(block_bytes),
        ),
    )(chunks, w9)

    conv = conv.reshape(n, h, w, cp_out)
    s_tot = sums[:, 0, :].sum(axis=0)
    q_tot = ssqs[:, 0, :].sum(axis=0)
    return conv, s_tot, q_tot


def _affine_relu(conv_f32, scale, shift, out_dtype):
    """Per-channel y = max(x*scale + shift, 0) over the lane-dense flat view."""
    n, h, w, cp = conv_f32.shape
    m = n * h * w
    tm = _pick_row_tile(m)
    x_flat = conv_f32.reshape(m, cp)
    p = jnp.stack([scale, shift], axis=0)            # (2, cp), single resident input

    block_bytes = tm * cp * (4 + jnp.dtype(out_dtype).itemsize) + 2 * cp * 4
    out = pl.pallas_call(
        _affine_relu_kernel,
        grid=(m // tm,),
        in_specs=[
            pl.BlockSpec((tm, cp), lambda i: (i, 0)),
            pl.BlockSpec((2, cp), lambda i: (0, 0)),                     # resident
        ],
        out_specs=pl.BlockSpec((tm, cp), lambda i: (i, 0)),
        out_shape=jax.ShapeDtypeStruct((m, cp), out_dtype),
        compiler_params=pltpu.CompilerParams(
            dimension_semantics=("parallel",),
            vmem_limit_bytes=_vmem_limit(block_bytes),
        ),
    )(x_flat, p)
    return out.reshape(n, h, w, cp)


# ------------------------------ unetConv2 module ------------------------------

def init_unet_conv2_params(key, in_size, out_size):
    """Deterministic parameter init (PyTorch-default-style uniform for convs)."""
    k1, k2 = jax.random.split(key)

    def conv_init(k, cin, cout):
        fan_in = cin * 3 * 3
        bound = 1.0 / (fan_in ** 0.5)
        kw, kb = jax.random.split(k)
        w = jax.random.uniform(kw, (3, 3, cin, cout), jnp.float32, -bound, bound)  # HWIO
        b = jax.random.uniform(kb, (cout,), jnp.float32, -bound, bound)
        return w, b

    w1, b1 = conv_init(k1, in_size, out_size)
    w2, b2 = conv_init(k2, out_size, out_size)
    return dict(
        w1=w1, b1=b1, g1=jnp.ones((out_size,), jnp.float32), be1=jnp.zeros((out_size,), jnp.float32),
        w2=w2, b2=b2, g2=jnp.ones((out_size,), jnp.float32), be2=jnp.zeros((out_size,), jnp.float32),
    )


def unet_conv2_forward(params, x_nchw, *, is_batchnorm=True, eps=1e-5,
                       compute_dtype=jnp.float32, row_tile=None):
    """Matches unetConv2.forward: (conv3x3 + [BN(batch stats)] + ReLU) x2, NCHW in/out.

    compute_dtype=jnp.bfloat16 is the v6e/v7x production setting (MXU feed and
    inter-stage activation in bf16); stats/accumulation/normalization stay f32.
    """
    n, cin, h, w = x_nchw.shape
    cout = params["w1"].shape[-1]
    cp_in = _round_up(cin, LANE)
    cp_out = _round_up(cout, LANE)

    # NCHW -> NHWC, channels zero-padded to lane multiples (layout plumbing).
    x = jnp.transpose(x_nchw, (0, 2, 3, 1)).astype(compute_dtype)
    x = jnp.pad(x, ((0, 0), (0, 0), (0, 0), (0, cp_in - cin)))

    def pad_w(w_hwio, ci_p, co_p):
        ci, co = w_hwio.shape[2], w_hwio.shape[3]
        wp = jnp.pad(w_hwio, ((0, 0), (0, 0), (0, ci_p - ci), (0, co_p - co)))
        return wp.reshape(9, ci_p, co_p).astype(compute_dtype)

    def pad_c(v):
        return jnp.pad(v.astype(jnp.float32), (0, cp_out - v.shape[0]))

    count = float(n * h * w)

    def stage(x_p, w9, bias, gamma, beta, out_dtype):
        conv, s, q = _conv3x3_raw(x_p, w9, row_tile=row_tile)
        if is_batchnorm:
            # Conv bias is skipped: a per-channel constant is exactly cancelled by
            # batch-mean subtraction.  Fold BN into one per-channel scale/shift.
            mean = s / count
            var = jnp.maximum(q / count - mean * mean, 0.0)   # biased variance
            scale = gamma * jax.lax.rsqrt(var + eps)
            shift = beta - mean * scale
        else:
            scale = jnp.ones_like(bias)
            shift = bias
        return _affine_relu(conv, scale, shift, out_dtype)

    y = stage(x, pad_w(params["w1"], cp_in, cp_out),
              pad_c(params["b1"]), pad_c(params["g1"]), pad_c(params["be1"]),
              compute_dtype)
    y = stage(y, pad_w(params["w2"], cp_out, cp_out),
              pad_c(params["b2"]), pad_c(params["g2"]), pad_c(params["be2"]),
              compute_dtype)

    # TODO(synk): the stage-1 normalize pass could be fused into stage-2's conv
    # kernel (apply scale/shift/ReLU to the halo'd tile in-kernel) to save one
    # more HBM round-trip of the activation.
    y = y[..., :cout].astype(jnp.float32)
    return jnp.transpose(y, (0, 3, 1, 2))                      # NHWC -> NCHW


# ------------------------------ pure-JAX reference ----------------------------

def _reference(params, x_nchw, *, is_batchnorm=True, eps=1e-5):
    def block(x, w, b, g, be):
        y = jax.lax.conv_general_dilated(
            x, w, window_strides=(1, 1), padding="SAME",
            dimension_numbers=("NCHW", "HWIO", "NCHW"))
        y = y + b[None, :, None, None]
        if is_batchnorm:
            mean = jnp.mean(y, axis=(0, 2, 3), keepdims=True)
            var = jnp.mean((y - mean) ** 2, axis=(0, 2, 3), keepdims=True)
            y = (y - mean) * jax.lax.rsqrt(var + eps)
            y = y * g[None, :, None, None] + be[None, :, None, None]
        return jnp.maximum(y, 0.0)

    y = block(x_nchw, params["w1"], params["b1"], params["g1"], params["be1"])
    y = block(y, params["w2"], params["b2"], params["g2"], params["be2"])
    return y


# ----------------------------------- main -------------------------------------

if __name__ == "__main__":
    key = jax.random.PRNGKey(0)
    k_x, k_p = jax.random.split(key)

    N, C_IN, H, W = 2, 4, 16, 16
    C_OUT = 8

    x = jax.random.normal(k_x, (N, C_IN, H, W), jnp.float32)
    params = init_unet_conv2_params(k_p, C_IN, C_OUT)

    ref_bn = _reference(params, x, is_batchnorm=True)
    ref_nobn = _reference(params, x, is_batchnorm=False)

    # f32 compute: tight check against the f32 reference (row_tile=8 -> 2 row
    # blocks per image so the halo'd grid path is actually exercised).
    fwd_f32 = jax.jit(functools.partial(unet_conv2_forward, is_batchnorm=True,
                                        compute_dtype=jnp.float32, row_tile=8))
    out = jax.block_until_ready(fwd_f32(params, x))
    assert out.shape == (N, C_OUT, H, W), out.shape
    err = float(jnp.max(jnp.abs(out - ref_bn)))
    assert err < 1e-3, err

    # bf16 MXU feed + bf16 inter-stage activation (v6e/v7x setting): coarse
    # sanity bound against the f32 reference.
    fwd_bf16 = jax.jit(functools.partial(unet_conv2_forward, is_batchnorm=True,
                                         compute_dtype=jnp.bfloat16, row_tile=8))
    out_bf = jax.block_until_ready(fwd_bf16(params, x))
    err_bf = float(jnp.max(jnp.abs(out_bf - ref_bn)))
    assert err_bf < 0.3, err_bf

    # is_batchnorm=False path (conv + bias + ReLU only).
    fwd_nobn = jax.jit(functools.partial(unet_conv2_forward, is_batchnorm=False,
                                         compute_dtype=jnp.float32))
    out_nobn = jax.block_until_ready(fwd_nobn(params, x))
    err_nobn = float(jnp.max(jnp.abs(out_nobn - ref_nobn)))
    assert err_nobn < 1e-3, err_nobn

    print("KERNEL_OK")
</pallas_src>

<mosaic_0001>
module attributes {stable_mosaic.version = 11 : i64} {
  func.func @_affine_relu_kernel(%arg0: i32, %arg1: memref<512x128xf32, #tpu.memory_space<vmem>>, %arg2: memref<2x128xf32, #tpu.memory_space<vmem>>, %arg3: memref<512x128xf32, #tpu.memory_space<vmem>>) attributes {dimension_semantics = [#tpu.dimension_semantics<parallel>], iteration_bounds = array<i64: 1>, scalar_prefetch = 0 : i64, scratch_operands = 0 : i64, tpu.core_type = #tpu.core_type<tc>, window_params = [{transform_indices = @transform_0, window_bounds = array<i64: 512, 128>}, {pipeline_mode = #tpu.pipeline_mode<synchronous>, transform_indices = @transform_1, window_bounds = array<i64: 2, 128>}, {transform_indices = @transform_2, window_bounds = array<i64: 512, 128>}]} {
    %c0 = arith.constant 0 : index
    %c0_0 = arith.constant 0 : index
    %0 = vector.load %arg2[%c0, %c0_0] : memref<2x128xf32, #tpu.memory_space<vmem>>, vector<2x128xf32>
    %c0_1 = arith.constant 0 : index
    %c0_2 = arith.constant 0 : index
    %1 = vector.load %arg1[%c0_1, %c0_2] : memref<512x128xf32, #tpu.memory_space<vmem>>, vector<512x128xf32>
    %2 = vector.extract_strided_slice %0 {offsets = [0, 0], sizes = [1, 128], strides = [1, 1]} : vector<2x128xf32> to vector<1x128xf32>
    %3 = vector.broadcast %2 : vector<1x128xf32> to vector<512x128xf32>
    %4 = arith.mulf %1, %3 : vector<512x128xf32>
    %5 = vector.extract_strided_slice %0 {offsets = [1, 0], sizes = [1, 128], strides = [1, 1]} : vector<2x128xf32> to vector<1x128xf32>
    %6 = vector.broadcast %5 : vector<1x128xf32> to vector<512x128xf32>
    %7 = arith.addf %4, %6 : vector<512x128xf32>
    %cst = arith.constant 0.000000e+00 : f32
    %8 = vector.broadcast %cst : f32 to vector<512x128xf32>
    %9 = arith.maximumf %7, %8 : vector<512x128xf32>
    %c0_3 = arith.constant 0 : index
    %c0_4 = arith.constant 0 : index
    %10 = vector.load %arg3[%c0_3, %c0_4] : memref<512x128xf32, #tpu.memory_space<vmem>>, vector<512x128xf32>
    tpu.vector_store %arg3[%c0_3, %c0_4], %9 {strides = array<i32>} : memref<512x128xf32, #tpu.memory_space<vmem>>, vector<512x128xf32>,
    return
  }
  func.func @transform_0(%arg0: i32) -> (i32, i32) {
    %c0_i32 = arith.constant 0 : i32
    %c0_i32_0 = arith.constant 0 : i32
    return %arg0, %c0_i32 : i32, i32
  }
  func.func @transform_1(%arg0: i32) -> (i32, i32) {
    %c0_i32 = arith.constant 0 : i32
    %c0_i32_0 = arith.constant 0 : i32
    %c0_i32_1 = arith.constant 0 : i32
    return %c0_i32, %c0_i32_0 : i32, i32
  }
  func.func @transform_2(%arg0: i32) -> (i32, i32) {
    %c0_i32 = arith.constant 0 : i32
    %c0_i32_0 = arith.constant 0 : i32
    return %arg0, %c0_i32 : i32, i32
  }
}

module attributes {stable_mosaic.version = 11 : i64} {
  func.func @_conv3x3_stats_kernel(%arg0: i32, %arg1: memref<1x10x18x128xf32, #tpu.memory_space<vmem>>, %arg2: memref<9x128x128xf32, #tpu.memory_space<vmem>>, %arg3: memref<1x8x16x128xf32, #tpu.memory_space<vmem>>, %arg4: memref<1x8x128xf32, #tpu.memory_space<vmem>>, %arg5: memref<1x8x128xf32, #tpu.memory_space<vmem>>) attributes {dimension_semantics = [#tpu.dimension_semantics<parallel>], iteration_bounds = array<i64: 4>, scalar_prefetch = 0 : i64, scratch_operands = 0 : i64, tpu.core_type = #tpu.core_type<tc>, window_params = [{transform_indices = @transform_0, window_bounds = array<i64: 1, 10, 18, 128>}, {pipeline_mode = #tpu.pipeline_mode<synchronous>, transform_indices = @transform_1, window_bounds = array<i64: 9, 128, 128>}, {transform_indices = @transform_2, window_bounds = array<i64: 1, 8, 16, 128>}, {transform_indices = @transform_3, window_bounds = array<i64: 1, 8, 128>}, {transform_indices = @transform_4, window_bounds = array<i64: 1, 8, 128>}]} {
    %c0 = arith.constant 0 : index
    %c0_0 = arith.constant 0 : index
    %c0_1 = arith.constant 0 : index
    %c0_2 = arith.constant 0 : index
    %0 = vector.load %arg1[%c0, %c0_0, %c0_1, %c0_2] : memref<1x10x18x128xf32, #tpu.memory_space<vmem>>, vector<1x10x18x128xf32>
    %1 = vector.shape_cast %0 : vector<1x10x18x128xf32> to vector<10x18x128xf32>
    %cst = arith.constant 0.000000e+00 : f32
    %2 = vector.broadcast %cst : f32 to vector<128x128xf32>
    %3 = vector.extract_strided_slice %1 {offsets = [0, 0, 0], sizes = [8, 16, 128], strides = [1, 1, 1]} : vector<10x18x128xf32> to vector<8x16x128xf32>
    %4 = vector.shape_cast %3 : vector<8x16x128xf32> to vector<128x128xf32>
    %c0_3 = arith.constant 0 : index
    %c0_4 = arith.constant 0 : index
    %c0_5 = arith.constant 0 : index
    %5 = vector.load %arg2[%c0_3, %c0_4, %c0_5] : memref<9x128x128xf32, #tpu.memory_space<vmem>>, vector<1x128x128xf32>
    %6 = vector.shape_cast %5 : vector<1x128x128xf32> to vector<128x128xf32>
    %cst_6 = arith.constant dense<0.000000e+00> : vector<128x128xf32>
    %7 = tpu.matmul %4, %6, %cst_6 {dimension_numbers = #tpu.dot_dimension_numbers<[1], [0], [0], [1], [0, 0, 1, 1], [], []>} : vector<128x128xf32>, vector<128x128xf32>, vector<128x128xf32> -> vector<128x128xf32>
    %8 = arith.addf %2, %7 : vector<128x128xf32>
    %9 = vector.extract_strided_slice %1 {offsets = [0, 1, 0], sizes = [8, 16, 128], strides = [1, 1, 1]} : vector<10x18x128xf32> to vector<8x16x128xf32>
    %10 = vector.shape_cast %9 : vector<8x16x128xf32> to vector<128x128xf32>
    %c1 = arith.constant 1 : index
    %c0_7 = arith.constant 0 : index
    %c0_8 = arith.constant 0 : index
    %11 = vector.load %arg2[%c1, %c0_7, %c0_8] : memref<9x128x128xf32, #tpu.memory_space<vmem>>, vector<1x128x128xf32>
    %12 = vector.shape_cast %11 : vector<1x128x128xf32> to vector<128x128xf32>
    %cst_9 = arith.constant dense<0.000000e+00> : vector<128x128xf32>
    %13 = tpu.matmul %10, %12, %cst_9 {dimension_numbers = #tpu.dot_dimension_numbers<[1], [0], [0], [1], [0, 0, 1, 1], [], []>} : vector<128x128xf32>, vector<128x128xf32>, vector<128x128xf32> -> vector<128x128xf32>
    %14 = arith.addf %8, %13 : vector<128x128xf32>
    %15 = vector.extract_strided_slice %1 {offsets = [0, 2, 0], sizes = [8, 16, 128], strides = [1, 1, 1]} : vector<10x18x128xf32> to vector<8x16x128xf32>
    %16 = vector.shape_cast %15 : vector<8x16x128xf32> to vector<128x128xf32>
    %c2 = arith.constant 2 : index
    %c0_10 = arith.constant 0 : index
    %c0_11 = arith.constant 0 : index
    %17 = vector.load %arg2[%c2, %c0_10, %c0_11] : memref<9x128x128xf32, #tpu.memory_space<vmem>>, vector<1x128x128xf32>
    %18 = vector.shape_cast %17 : vector<1x128x128xf32> to vector<128x128xf32>
    %cst_12 = arith.constant dense<0.000000e+00> : vector<128x128xf32>
    %19 = tpu.matmul %16, %18, %cst_12 {dimension_numbers = #tpu.dot_dimension_numbers<[1], [0], [0], [1], [0, 0, 1, 1], [], []>} : vector<128x128xf32>, vector<128x128xf32>, vector<128x128xf32> -> vector<128x128xf32>
    %20 = arith.addf %14, %19 : vector<128x128xf32>
    %21 = vector.extract_strided_slice %1 {offsets = [1, 0, 0], sizes = [8, 16, 128], strides = [1, 1, 1]} : vector<10x18x128xf32> to vector<8x16x128xf32>
    %22 = vector.shape_cast %21 : vector<8x16x128xf32> to vector<128x128xf32>
    %c3 = arith.constant 3 : index
    %c0_13 = arith.constant 0 : index
    %c0_14 = arith.constant 0 : index
    %23 = vector.load %arg2[%c3, %c0_13, %c0_14] : memref<9x128x128xf32, #tpu.memory_space<vmem>>, vector<1x128x128xf32>
    %24 = vector.shape_cast %23 : vector<1x128x128xf32> to vector<128x128xf32>
    %cst_15 = arith.constant dense<0.000000e+00> : vector<128x128xf32>
    %25 = tpu.matmul %22, %24, %cst_15 {dimension_numbers = #tpu.dot_dimension_numbers<[1], [0], [0], [1], [0, 0, 1, 1], [], []>} : vector<128x128xf32>, vector<128x128xf32>, vector<128x128xf32> -> vector<128x128xf32>
    %26 = arith.addf %20, %25 : vector<128x128xf32>
    %27 = vector.extract_strided_slice %1 {offsets = [1, 1, 0], sizes = [8, 16, 128], strides = [1, 1, 1]} : vector<10x18x128xf32> to vector<8x16x128xf32>
    %28 = vector.shape_cast %27 : vector<8x16x128xf32> to vector<128x128xf32>
    %c4 = arith.constant 4 : index
    %c0_16 = arith.constant 0 : index
    %c0_17 = arith.constant 0 : index
    %29 = vector.load %arg2[%c4, %c0_16, %c0_17] : memref<9x128x128xf32, #tpu.memory_space<vmem>>, vector<1x128x128xf32>
    %30 = vector.shape_cast %29 : vector<1x128x128xf32> to vector<128x128xf32>
    %cst_18 = arith.constant dense<0.000000e+00> : vector<128x128xf32>
    %31 = tpu.matmul %28, %30, %cst_18 {dimension_numbers = #tpu.dot_dimension_numbers<[1], [0], [0], [1], [0, 0, 1, 1], [], []>} : vector<128x128xf32>, vector<128x128xf32>, vector<128x128xf32> -> vector<128x128xf32>
    %32 = arith.addf %26, %31 : vector<128x128xf32>
    %33 = vector.extract_strided_slice %1 {offsets = [1, 2, 0], sizes = [8, 16, 128], strides = [1, 1, 1]} : vector<10x18x128xf32> to vector<8x16x128xf32>
    %34 = vector.shape_cast %33 : vector<8x16x128xf32> to vector<128x128xf32>
    %c5 = arith.constant 5 : index
    %c0_19 = arith.constant 0 : index
    %c0_20 = arith.constant 0 : index
    %35 = vector.load %arg2[%c5, %c0_19, %c0_20] : memref<9x128x128xf32, #tpu.memory_space<vmem>>, vector<1x128x128xf32>
    %36 = vector.shape_cast %35 : vector<1x128x128xf32> to vector<128x128xf32>
    %cst_21 = arith.constant dense<0.000000e+00> : vector<128x128xf32>
    %37 = tpu.matmul %34, %36, %cst_21 {dimension_numbers = #tpu.dot_dimension_numbers<[1], [0], [0], [1], [0, 0, 1, 1], [], []>} : vector<128x128xf32>, vector<128x128xf32>, vector<128x128xf32> -> vector<128x128xf32>
    %38 = arith.addf %32, %37 : vector<128x128xf32>
    %39 = vector.extract_strided_slice %1 {offsets = [2, 0, 0], sizes = [8, 16, 128], strides = [1, 1, 1]} : vector<10x18x128xf32> to vector<8x16x128xf32>
    %40 = vector.shape_cast %39 : vector<8x16x128xf32> to vector<128x128xf32>
    %c6 = arith.constant 6 : index
    %c0_22 = arith.constant 0 : index
    %c0_23 = arith.constant 0 : index
    %41 = vector.load %arg2[%c6, %c0_22, %c0_23] : memref<9x128x128xf32, #tpu.memory_space<vmem>>, vector<1x128x128xf32>
    %42 = vector.shape_cast %41 : vector<1x128x128xf32> to vector<128x128xf32>
    %cst_24 = arith.constant dense<0.000000e+00> : vector<128x128xf32>
    %43 = tpu.matmul %40, %42, %cst_24 {dimension_numbers = #tpu.dot_dimension_numbers<[1], [0], [0], [1], [0, 0, 1, 1], [], []>} : vector<128x128xf32>, vector<128x128xf32>, vector<128x128xf32> -> vector<128x128xf32>
    %44 = arith.addf %38, %43 : vector<128x128xf32>
    %45 = vector.extract_strided_slice %1 {offsets = [2, 1, 0], sizes = [8, 16, 128], strides = [1, 1, 1]} : vector<10x18x128xf32> to vector<8x16x128xf32>
    %46 = vector.shape_cast %45 : vector<8x16x128xf32> to vector<128x128xf32>
    %c7 = arith.constant 7 : index
    %c0_25 = arith.constant 0 : index
    %c0_26 = arith.constant 0 : index
    %47 = vector.load %arg2[%c7, %c0_25, %c0_26] : memref<9x128x128xf32, #tpu.memory_space<vmem>>, vector<1x128x128xf32>
    %48 = vector.shape_cast %47 : vector<1x128x128xf32> to vector<128x128xf32>
    %cst_27 = arith.constant dense<0.000000e+00> : vector<128x128xf32>
    %49 = tpu.matmul %46, %48, %cst_27 {dimension_numbers = #tpu.dot_dimension_numbers<[1], [0], [0], [1], [0, 0, 1, 1], [], []>} : vector<128x128xf32>, vector<128x128xf32>, vector<128x128xf32> -> vector<128x128xf32>
    %50 = arith.addf %44, %49 : vector<128x128xf32>
    %51 = vector.extract_strided_slice %1 {offsets = [2, 2, 0], sizes = [8, 16, 128], strides = [1, 1, 1]} : vector<10x18x128xf32> to vector<8x16x128xf32>
    %52 = vector.shape_cast %51 : vector<8x16x128xf32> to vector<128x128xf32>
    %c8 = arith.constant 8 : index
    %c0_28 = arith.constant 0 : index
    %c0_29 = arith.constant 0 : index
    %53 = vector.load %arg2[%c8, %c0_28, %c0_29] : memref<9x128x128xf32, #tpu.memory_space<vmem>>, vector<1x128x128xf32>
    %54 = vector.shape_cast %53 : vector<1x128x128xf32> to vector<128x128xf32>
    %cst_30 = arith.constant dense<0.000000e+00> : vector<128x128xf32>
    %55 = tpu.matmul %52, %54, %cst_30 {dimension_numbers = #tpu.dot_dimension_numbers<[1], [0], [0], [1], [0, 0, 1, 1], [], []>} : vector<128x128xf32>, vector<128x128xf32>, vector<128x128xf32> -> vector<128x128xf32>
    %56 = arith.addf %50, %55 : vector<128x128xf32>
    %57 = vector.shape_cast %56 : vector<128x128xf32> to vector<8x16x128xf32>
    %c0_31 = arith.constant 0 : index
    %c0_32 = arith.constant 0 : index
    %c0_33 = arith.constant 0 : index
    %c0_34 = arith.constant 0 : index
    %58 = vector.load %arg3[%c0_31, %c0_32, %c0_33, %c0_34] : memref<1x8x16x128xf32, #tpu.memory_space<vmem>>, vector<1x8x16x128xf32>
    %59 = vector.shape_cast %58 : vector<1x8x16x128xf32> to vector<8x16x128xf32>
    %60 = vector.shape_cast %57 : vector<8x16x128xf32> to vector<1x8x16x128xf32>
    tpu.vector_store %arg3[%c0_31, %c0_32, %c0_33, %c0_34], %60 {strides = array<i32>} : memref<1x8x16x128xf32, #tpu.memory_space<vmem>>, vector<1x8x16x128xf32>,
    %cst_35 = arith.constant 1.000000e+00 : f32
    %61 = vector.broadcast %cst_35 : f32 to vector<8x128xf32>
    %cst_36 = arith.constant dense<0.000000e+00> : vector<8x128xf32>
    %62 = tpu.matmul %61, %56, %cst_36 {dimension_numbers = #tpu.dot_dimension_numbers<[1], [0], [0], [1], [0, 0, 1, 1], [], []>} : vector<8x128xf32>, vector<128x128xf32>, vector<8x128xf32> -> vector<8x128xf32>
    %c0_37 = arith.constant 0 : index
    %c0_38 = arith.constant 0 : index
    %c0_39 = arith.constant 0 : index
    %63 = vector.load %arg4[%c0_37, %c0_38, %c0_39] : memref<1x8x128xf32, #tpu.memory_space<vmem>>, vector<1x8x128xf32>
    %64 = vector.shape_cast %63 : vector<1x8x128xf32> to vector<8x128xf32>
    %65 = vector.shape_cast %62 : vector<8x128xf32> to vector<1x8x128xf32>
    tpu.vector_store %arg4[%c0_37, %c0_38, %c0_39], %65 {strides = array<i32>} : memref<1x8x128xf32, #tpu.memory_space<vmem>>, vector<1x8x128xf32>,
    %66 = arith.mulf %56, %56 : vector<128x128xf32>
    %cst_40 = arith.constant dense<0.000000e+00> : vector<8x128xf32>
    %67 = tpu.matmul %61, %66, %cst_40 {dimension_numbers = #tpu.dot_dimension_numbers<[1], [0], [0], [1], [0, 0, 1, 1], [], []>} : vector<8x128xf32>, vector<128x128xf32>, vector<8x128xf32> -> vector<8x128xf32>
    %c0_41 = arith.constant 0 : index
    %c0_42 = arith.constant 0 : index
    %c0_43 = arith.constant 0 : index
    %68 = vector.load %arg5[%c0_41, %c0_42, %c0_43] : memref<1x8x128xf32, #tpu.memory_space<vmem>>, vector<1x8x128xf32>
    %69 = vector.shape_cast %68 : vector<1x8x128xf32> to vector<8x128xf32>
    %70 = vector.shape_cast %67 : vector<8x128xf32> to vector<1x8x128xf32>
    tpu.vector_store %arg5[%c0_41, %c0_42, %c0_43], %70 {strides = array<i32>} : memref<1x8x128xf32, #tpu.memory_space<vmem>>, vector<1x8x128xf32>,
    return
  }
  func.func @transform_0(%arg0: i32) -> (i32, i32, i32, i32) {
    %c0_i32 = arith.constant 0 : i32
    %c0_i32_0 = arith.constant 0 : i32
    %c0_i32_1 = arith.constant 0 : i32
    %c0_i32_2 = arith.constant 0 : i32
    return %arg0, %c0_i32, %c0_i32_0, %c0_i32_1 : i32, i32, i32, i32
  }
  func.func @transform_1(%arg0: i32) -> (i32, i32, i32) {
    %c0_i32 = arith.constant 0 : i32
    %c0_i32_0 = arith.constant 0 : i32
    %c0_i32_1 = arith.constant 0 : i32
    %c0_i32_2 = arith.constant 0 : i32
    return %c0_i32, %c0_i32_0, %c0_i32_1 : i32, i32, i32
  }
  func.func @transform_2(%arg0: i32) -> (i32, i32, i32, i32) {
    %c0_i32 = arith.constant 0 : i32
    %c0_i32_0 = arith.constant 0 : i32
    %c0_i32_1 = arith.constant 0 : i32
    %c0_i32_2 = arith.constant 0 : i32
    return %arg0, %c0_i32, %c0_i32_0, %c0_i32_1 : i32, i32, i32, i32
  }
  func.func @transform_3(%arg0: i32) -> (i32, i32, i32) {
    %c0_i32 = arith.constant 0 : i32
    %c0_i32_0 = arith.constant 0 : i32
    %c0_i32_1 = arith.constant 0 : i32
    return %arg0, %c0_i32, %c0_i32_0 : i32, i32, i32
  }
  func.func @transform_4(%arg0: i32) -> (i32, i32, i32) {
    %c0_i32 = arith.constant 0 : i32
    %c0_i32_0 = arith.constant 0 : i32
    %c0_i32_1 = arith.constant 0 : i32
    return %arg0, %c0_i32, %c0_i32_0 : i32, i32, i32
  }
}

</mosaic_0001>

<llo_original>
// kernel: unet_conv2_forward.5
$region0: #{unet_conv2_forward.5}
  #allocation0 [shape = 'u32[]', space=smem, size = 0x4, offset = 0x4, fixed_abs, tag = 'smem constant byte address 0x4 - core index']
  #allocation1 [shape = 'u32[144,128]{1,0:T(1,128)}', space=vmem, size = 0x12000, scoped, tag = 'internal scratch']
  %s0 = inlined_call_operand.vmem [shape: f32[512,128], index: 0, kind: input, shape index: {}]
  %s1 = inlined_call_operand.vmem [shape: f32[2,128], index: 1, kind: input, shape index: {}]
  %s2 = inlined_call_operand.vmem [shape: f32[512,128], index: 2, kind: output, shape index: {}]
  %s3 = sld [smem:[#allocation0]]
  $region18: #{unet_conv2_forward.5} parent=0
    _
  %s5 = ssub.s32 1, %s3
  %s6 = scalar_select 0, %s5, %s3
  // Predicated region
  $region2: #{unet_conv2_forward.5} parent=0 // pred_check
    _
  $region3: #{unet_conv2_forward.5} parent=0 // pred_check_branch
    %8 = sbr.rel (0) target = $region5
  $region4: #{unet_conv2_forward.5} parent=0 // pred_region
    _
  $region5: #{unet_conv2_forward.5} parent=0 // pred_fallthru
    _
  // Predicated region
  $region6: #{unet_conv2_forward.5} parent=0 // pred_check
    _
  $region7: #{unet_conv2_forward.5} parent=0 // pred_check_branch
    %10 = sbr.rel (0) target = $region9
  $region8: #{unet_conv2_forward.5} parent=0 // pred_region
    _
  $region9: #{unet_conv2_forward.5} parent=0 // pred_fallthru
    _
  %v11 = vld [vmem:[%s1] sm:$0x3]
  %v12 = vld [vmem:[%s0] sm:$0xff]
  %v13 = vld [vmem:[%s0 + $0x8] sm:$0xff]
  %v14 = vld [vmem:[%s0 + $0x10] sm:$0xff]
  %v15 = vld [vmem:[%s0 + $0x18] sm:$0xff]
  %v16 = vld [vmem:[%s0 + $0x20] sm:$0xff]
  %v17 = vld [vmem:[%s0 + $0x28] sm:$0xff]
  %v18 = vld [vmem:[%s0 + $0x30] sm:$0xff]
  %v19 = vld [vmem:[%s0 + $0x38] sm:$0xff]
  %v20 = vld [vmem:[%s0 + $0x40] sm:$0xff]
  %v21 = vld [vmem:[%s0 + $0x48] sm:$0xff]
  %v22 = vld [vmem:[%s0 + $0x50] sm:$0xff]
  %v23 = vld [vmem:[%s0 + $0x58] sm:$0xff]
  %v24 = vld [vmem:[%s0 + $0x60] sm:$0xff]
  %v25 = vld [vmem:[%s0 + $0x68] sm:$0xff]
  %v26 = vld [vmem:[%s0 + $0x70] sm:$0xff]
  %v27 = vld [vmem:[%s0 + $0x78] sm:$0xff]
  %v28 = vld [vmem:[%s0 + $0x80] sm:$0xff]
  %v29 = vld [vmem:[%s0 + $0x88] sm:$0xff]
  %v30 = vld [vmem:[%s0 + $0x90] sm:$0xff]
  %v31 = vld [vmem:[%s0 + $0x98] sm:$0xff]
  %v32 = vld [vmem:[%s0 + $0xa0] sm:$0xff]
  %v33 = vld [vmem:[%s0 + $0xa8] sm:$0xff]
  %v34 = vld [vmem:[%s0 + $0xb0] sm:$0xff]
  %v35 = vld [vmem:[%s0 + $0xb8] sm:$0xff]
  %v36 = vld [vmem:[%s0 + $0xc0] sm:$0xff]
  %v37 = vld [vmem:[%s0 + $0xc8] sm:$0xff]
  %v38 = vld [vmem:[%s0 + $0xd0] sm:$0xff]
  %v39 = vld [vmem:[%s0 + $0xd8] sm:$0xff]
  %v40 = vld [vmem:[%s0 + $0xe0] sm:$0xff]
  %v41 = vld [vmem:[%s0 + $0xe8] sm:$0xff]
  %v42 = vld [vmem:[%s0 + $0xf0] sm:$0xff]
  %v43 = vld [vmem:[%s0 + $0xf8] sm:$0xff]
  %v44 = vld [vmem:[%s0 + $0x100] sm:$0xff]
  %v45 = vld [vmem:[%s0 + $0x108] sm:$0xff]
  %v46 = vld [vmem:[%s0 + $0x110] sm:$0xff]
  %v47 = vld [vmem:[%s0 + $0x118] sm:$0xff]
  %v48 = vld [vmem:[%s0 + $0x120] sm:$0xff]
  %v49 = vld [vmem:[%s0 + $0x128] sm:$0xff]
  %v50 = vld [vmem:[%s0 + $0x130] sm:$0xff]
  %v51 = vld [vmem:[%s0 + $0x138] sm:$0xff]
  %v52 = vld [vmem:[%s0 + $0x140] sm:$0xff]
  %v53 = vld [vmem:[%s0 + $0x148] sm:$0xff]
  %v54 = vld [vmem:[%s0 + $0x150] sm:$0xff]
  %v55 = vld [vmem:[%s0 + $0x158] sm:$0xff]
  %v56 = vld [vmem:[%s0 + $0x160] sm:$0xff]
  %v57 = vld [vmem:[%s0 + $0x168] sm:$0xff]
  %v58 = vld [vmem:[%s0 + $0x170] sm:$0xff]
  %v59 = vld [vmem:[%s0 + $0x178] sm:$0xff]
  %v60 = vld [vmem:[%s0 + $0x180] sm:$0xff]
  %v61 = vld [vmem:[%s0 + $0x188] sm:$0xff]
  %v62 = vld [vmem:[%s0 + $0x190] sm:$0xff]
  %v63 = vld [vmem:[%s0 + $0x198] sm:$0xff]
  %v64 = vld [vmem:[%s0 + $0x1a0] sm:$0xff]
  %v65 = vld [vmem:[%s0 + $0x1a8] sm:$0xff]
  %v66 = vld [vmem:[%s0 + $0x1b0] sm:$0xff]
  %v67 = vld [vmem:[%s0 + $0x1b8] sm:$0xff]
  %v68 = vld [vmem:[%s0 + $0x1c0] sm:$0xff]
  %v69 = vld [vmem:[%s0 + $0x1c8] sm:$0xff]
  %v70 = vld [vmem:[%s0 + $0x1d0] sm:$0xff]
  %v71 = vld [vmem:[%s0 + $0x1d8] sm:$0xff]
  %v72 = vld [vmem:[%s0 + $0x1e0] sm:$0xff]
  %v73 = vld [vmem:[%s0 + $0x1e8] sm:$0xff]
  %v74 = vld [vmem:[%s0 + $0x1f0] sm:$0xff]
  %v75 = vld [vmem:[%s0 + $0x1f8] sm:$0xff]
  %v76 = vlaneseq
  %v77 = vshrl.u32 %v76, 7
  %v78 = vsub.s32 0, %v77
  %v79 = vrot.slane %v11, %v78
  %v80 = vmul.f32 %v12, %v79
  %v81 = vmul.f32 %v13, %v79
  %v82 = vmul.f32 %v14, %v79
  %v83 = vmul.f32 %v15, %v79
  %v84 = vmul.f32 %v16, %v79
  %v85 = vmul.f32 %v17, %v79
  %v86 = vmul.f32 %v18, %v79
  %v87 = vmul.f32 %v19, %v79
  %v88 = vmul.f32 %v20, %v79
  %v89 = vmul.f32 %v21, %v79
  %v90 = vmul.f32 %v22, %v79
  %v91 = vmul.f32 %v23, %v79
  %v92 = vmul.f32 %v24, %v79
  %v93 = vmul.f32 %v25, %v79
  %v94 = vmul.f32 %v26, %v79
  %v95 = vmul.f32 %v27, %v79
  %v96 = vmul.f32 %v28, %v79
  %v97 = vmul.f32 %v29, %v79
  %v98 = vmul.f32 %v30, %v79
  %v99 = vmul.f32 %v31, %v79
  %v100 = vmul.f32 %v32, %v79
  %v101 = vmul.f32 %v33, %v79
  %v102 = vmul.f32 %v34, %v79
  %v103 = vmul.f32 %v35, %v79
  %v104 = vmul.f32 %v36, %v79
  %v105 = vmul.f32 %v37, %v79
  %v106 = vmul.f32 %v38, %v79
  %v107 = vmul.f32 %v39, %v79
  %v108 = vmul.f32 %v40, %v79
  %v109 = vmul.f32 %v41, %v79
  %v110 = vmul.f32 %v42, %v79
  %v111 = vmul.f32 %v43, %v79
  %v112 = vmul.f32 %v44, %v79
  %v113 = vmul.f32 %v45, %v79
  %v114 = vmul.f32 %v46, %v79
  %v115 = vmul.f32 %v47, %v79
  %v116 = vmul.f32 %v48, %v79
  %v117 = vmul.f32 %v49, %v79
  %v118 = vmul.f32 %v50, %v79
  %v119 = vmul.f32 %v51, %v79
  %v120 = vmul.f32 %v52, %v79
  %v121 = vmul.f32 %v53, %v79
  %v122 = vmul.f32 %v54, %v79
  %v123 = vmul.f32 %v55, %v79
  %v124 = vmul.f32 %v56, %v79
  %v125 = vmul.f32 %v57, %v79
  %v126 = vmul.f32 %v58, %v79
  %v127 = vmul.f32 %v59, %v79
  %v128 = vmul.f32 %v60, %v79
  %v129 = vmul.f32 %v61, %v79
  %v130 = vmul.f32 %v62, %v79
  %v131 = vmul.f32 %v63, %v79
  %v132 = vmul.f32 %v64, %v79
  %v133 = vmul.f32 %v65, %v79
  %v134 = vmul.f32 %v66, %v79
  %v135 = vmul.f32 %v67, %v79
  %v136 = vmul.f32 %v68, %v79
  %v137 = vmul.f32 %v69, %v79
  %v138 = vmul.f32 %v70, %v79
  %v139 = vmul.f32 %v71, %v79
  %v140 = vmul.f32 %v72, %v79
  %v141 = vmul.f32 %v73, %v79
  %v142 = vmul.f32 %v74, %v79
  %v143 = vmul.f32 %v75, %v79
  %v144 = vlaneseq
  %v145 = vshrl.u32 %v144, 7
  %v146 = vsub.s32 1, %v145
  %v147 = vrot.slane %v11, %v146
  %v148 = vadd.f32 %v80, %v147
  %v149 = vadd.f32 %v81, %v147
  %v150 = vadd.f32 %v82, %v147
  %v151 = vadd.f32 %v83, %v147
  %v152 = vadd.f32 %v84, %v147
  %v153 = vadd.f32 %v85, %v147
  %v154 = vadd.f32 %v86, %v147
  %v155 = vadd.f32 %v87, %v147
  %v156 = vadd.f32 %v88, %v147
  %v157 = vadd.f32 %v89, %v147
  %v158 = vadd.f32 %v90, %v147
  %v159 = vadd.f32 %v91, %v147
  %v160 = vadd.f32 %v92, %v147
  %v161 = vadd.f32 %v93, %v147
  %v162 = vadd.f32 %v94, %v147
  %v163 = vadd.f32 %v95, %v147
  %v164 = vadd.f32 %v96, %v147
  %v165 = vadd.f32 %v97, %v147
  %v166 = vadd.f32 %v98, %v147
  %v167 = vadd.f32 %v99, %v147
  %v168 = vadd.f32 %v100, %v147
  %v169 = vadd.f32 %v101, %v147
  %v170 = vadd.f32 %v102, %v147
  %v171 = vadd.f32 %v103, %v147
  %v172 = vadd.f32 %v104, %v147
  %v173 = vadd.f32 %v105, %v147
  %v174 = vadd.f32 %v106, %v147
  %v175 = vadd.f32 %v107, %v147
  %v176 = vadd.f32 %v108, %v147
  %v177 = vadd.f32 %v109, %v147
  %v178 = vadd.f32 %v110, %v147
  %v179 = vadd.f32 %v111, %v147
  %v180 = vadd.f32 %v112, %v147
  %v181 = vadd.f32 %v113, %v147
  %v182 = vadd.f32 %v114, %v147
  %v183 = vadd.f32 %v115, %v147
  %v184 = vadd.f32 %v116, %v147
  %v185 = vadd.f32 %v117, %v147
  %v186 = vadd.f32 %v118, %v147
  %v187 = vadd.f32 %v119, %v147
  %v188 = vadd.f32 %v120, %v147
  %v189 = vadd.f32 %v121, %v147
  %v190 = vadd.f32 %v122, %v147
  %v191 = vadd.f32 %v123, %v147
  %v192 = vadd.f32 %v124, %v147
  %v193 = vadd.f32 %v125, %v147
  %v194 = vadd.f32 %v126, %v147
  %v195 = vadd.f32 %v127, %v147
  %v196 = vadd.f32 %v128, %v147
  %v197 = vadd.f32 %v129, %v147
  %v198 = vadd.f32 %v130, %v147
  %v199 = vadd.f32 %v131, %v147
  %v200 = vadd.f32 %v132, %v147
  %v201 = vadd.f32 %v133, %v147
  %v202 = vadd.f32 %v134, %v147
  %v203 = vadd.f32 %v135, %v147
  %v204 = vadd.f32 %v136, %v147
  %v205 = vadd.f32 %v137, %v147
  %v206 = vadd.f32 %v138, %v147
  %v207 = vadd.f32 %v139, %v147
  %v208 = vadd.f32 %v140, %v147
  %v209 = vadd.f32 %v141, %v147
  %v210 = vadd.f32 %v142, %v147
  %v211 = vadd.f32 %v143, %v147
  %v212 = vmax.f32 %v148, 0.0
  %v213 = vmax.f32 %v149, 0.0
  %v214 = vmax.f32 %v150, 0.0
  %v215 = vmax.f32 %v151, 0.0
  %v216 = vmax.f32 %v152, 0.0
  %v217 = vmax.f32 %v153, 0.0
  %v218 = vmax.f32 %v154, 0.0
  %v219 = vmax.f32 %v155, 0.0
  %v220 = vmax.f32 %v156, 0.0
  %v221 = vmax.f32 %v157, 0.0
  %v222 = vmax.f32 %v158, 0.0
  %v223 = vmax.f32 %v159, 0.0
  %v224 = vmax.f32 %v160, 0.0
  %v225 = vmax.f32 %v161, 0.0
  %v226 = vmax.f32 %v162, 0.0
  %v227 = vmax.f32 %v163, 0.0
  %v228 = vmax.f32 %v164, 0.0
  %v229 = vmax.f32 %v165, 0.0
  %v230 = vmax.f32 %v166, 0.0
  %v231 = vmax.f32 %v167, 0.0
  %v232 = vmax.f32 %v168, 0.0
  %v233 = vmax.f32 %v169, 0.0
  %v234 = vmax.f32 %v170, 0.0
  %v235 = vmax.f32 %v171, 0.0
  %v236 = vmax.f32 %v172, 0.0
  %v237 = vmax.f32 %v173, 0.0
  %v238 = vmax.f32 %v174, 0.0
  %v239 = vmax.f32 %v175, 0.0
  %v240 = vmax.f32 %v176, 0.0
  %v241 = vmax.f32 %v177, 0.0
  %v242 = vmax.f32 %v178, 0.0
  %v243 = vmax.f32 %v179, 0.0
  %v244 = vmax.f32 %v180, 0.0
  %v245 = vmax.f32 %v181, 0.0
  %v246 = vmax.f32 %v182, 0.0
  %v247 = vmax.f32 %v183, 0.0
  %v248 = vmax.f32 %v184, 0.0
  %v249 = vmax.f32 %v185, 0.0
  %v250 = vmax.f32 %v186, 0.0
  %v251 = vmax.f32 %v187, 0.0
  %v252 = vmax.f32 %v188, 0.0
  %v253 = vmax.f32 %v189, 0.0
  %v254 = vmax.f32 %v190, 0.0
  %v255 = vmax.f32 %v191, 0.0
  %v256 = vmax.f32 %v192, 0.0
  %v257 = vmax.f32 %v193, 0.0
  %v258 = vmax.f32 %v194, 0.0
  %v259 = vmax.f32 %v195, 0.0
  %v260 = vmax.f32 %v196, 0.0
  %v261 = vmax.f32 %v197, 0.0
  %v262 = vmax.f32 %v198, 0.0
  %v263 = vmax.f32 %v199, 0.0
  %v264 = vmax.f32 %v200, 0.0
  %v265 = vmax.f32 %v201, 0.0
  %v266 = vmax.f32 %v202, 0.0
  %v267 = vmax.f32 %v203, 0.0
  %v268 = vmax.f32 %v204, 0.0
  %v269 = vmax.f32 %v205, 0.0
  %v270 = vmax.f32 %v206, 0.0
  %v271 = vmax.f32 %v207, 0.0
  %v272 = vmax.f32 %v208, 0.0
  %v273 = vmax.f32 %v209, 0.0
  %v274 = vmax.f32 %v210, 0.0
  %v275 = vmax.f32 %v211, 0.0
  %276 = vst [vmem:[%s2] sm:$0xff] %v212
  %277 = vst [vmem:[%s2 + $0x8] sm:$0xff] %v213
  %278 = vst [vmem:[%s2 + $0x10] sm:$0xff] %v214
  %279 = vst [vmem:[%s2 + $0x18] sm:$0xff] %v215
  %280 = vst [vmem:[%s2 + $0x20] sm:$0xff] %v216
  %281 = vst [vmem:[%s2 + $0x28] sm:$0xff] %v217
  %282 = vst [vmem:[%s2 + $0x30] sm:$0xff] %v218
  %283 = vst [vmem:[%s2 + $0x38] sm:$0xff] %v219
  %284 = vst [vmem:[%s2 + $0x40] sm:$0xff] %v220
  %285 = vst [vmem:[%s2 + $0x48] sm:$0xff] %v221
  %286 = vst [vmem:[%s2 + $0x50] sm:$0xff] %v222
  %287 = vst [vmem:[%s2 + $0x58] sm:$0xff] %v223
  %288 = vst [vmem:[%s2 + $0x60] sm:$0xff] %v224
  %289 = vst [vmem:[%s2 + $0x68] sm:$0xff] %v225
  %290 = vst [vmem:[%s2 + $0x70] sm:$0xff] %v226
  %291 = vst [vmem:[%s2 + $0x78] sm:$0xff] %v227
  %292 = vst [vmem:[%s2 + $0x80] sm:$0xff] %v228
  %293 = vst [vmem:[%s2 + $0x88] sm:$0xff] %v229
  %294 = vst [vmem:[%s2 + $0x90] sm:$0xff] %v230
  %295 = vst [vmem:[%s2 + $0x98] sm:$0xff] %v231
  %296 = vst [vmem:[%s2 + $0xa0] sm:$0xff] %v232
  %297 = vst [vmem:[%s2 + $0xa8] sm:$0xff] %v233
  %298 = vst [vmem:[%s2 + $0xb0] sm:$0xff] %v234
  %299 = vst [vmem:[%s2 + $0xb8] sm:$0xff] %v235
  %300 = vst [vmem:[%s2 + $0xc0] sm:$0xff] %v236
  %301 = vst [vmem:[%s2 + $0xc8] sm:$0xff] %v237
  %302 = vst [vmem:[%s2 + $0xd0] sm:$0xff] %v238
  %303 = vst [vmem:[%s2 + $0xd8] sm:$0xff] %v239
  %304 = vst [vmem:[%s2 + $0xe0] sm:$0xff] %v240
  %305 = vst [vmem:[%s2 + $0xe8] sm:$0xff] %v241
  %306 = vst [vmem:[%s2 + $0xf0] sm:$0xff] %v242
  %307 = vst [vmem:[%s2 + $0xf8] sm:$0xff] %v243
  %308 = vst [vmem:[%s2 + $0x100] sm:$0xff] %v244
  %309 = vst [vmem:[%s2 + $0x108] sm:$0xff] %v245
  %310 = vst [vmem:[%s2 + $0x110] sm:$0xff] %v246
  %311 = vst [vmem:[%s2 + $0x118] sm:$0xff] %v247
  %312 = vst [vmem:[%s2 + $0x120] sm:$0xff] %v248
  %313 = vst [vmem:[%s2 + $0x128] sm:$0xff] %v249
  %314 = vst [vmem:[%s2 + $0x130] sm:$0xff] %v250
  %315 = vst [vmem:[%s2 + $0x138] sm:$0xff] %v251
  %316 = vst [vmem:[%s2 + $0x140] sm:$0xff] %v252
  %317 = vst [vmem:[%s2 + $0x148] sm:$0xff] %v253
  %318 = vst [vmem:[%s2 + $0x150] sm:$0xff] %v254
  %319 = vst [vmem:[%s2 + $0x158] sm:$0xff] %v255
  %320 = vst [vmem:[%s2 + $0x160] sm:$0xff] %v256
  %321 = vst [vmem:[%s2 + $0x168] sm:$0xff] %v257
  %322 = vst [vmem:[%s2 + $0x170] sm:$0xff] %v258
  %323 = vst [vmem:[%s2 + $0x178] sm:$0xff] %v259
  %324 = vst [vmem:[%s2 + $0x180] sm:$0xff] %v260
  %325 = vst [vmem:[%s2 + $0x188] sm:$0xff] %v261
  %326 = vst [vmem:[%s2 + $0x190] sm:$0xff] %v262
  %327 = vst [vmem:[%s2 + $0x198] sm:$0xff] %v263
  %328 = vst [vmem:[%s2 + $0x1a0] sm:$0xff] %v264
  %329 = vst [vmem:[%s2 + $0x1a8] sm:$0xff] %v265
  %330 = vst [vmem:[%s2 + $0x1b0] sm:$0xff] %v266
  %331 = vst [vmem:[%s2 + $0x1b8] sm:$0xff] %v267
  %332 = vst [vmem:[%s2 + $0x1c0] sm:$0xff] %v268
  %333 = vst [vmem:[%s2 + $0x1c8] sm:$0xff] %v269
  %334 = vst [vmem:[%s2 + $0x1d0] sm:$0xff] %v270
  %335 = vst [vmem:[%s2 + $0x1d8] sm:$0xff] %v271
  %336 = vst [vmem:[%s2 + $0x1e0] sm:$0xff] %v272
  %337 = vst [vmem:[%s2 + $0x1e8] sm:$0xff] %v273
  %338 = vst [vmem:[%s2 + $0x1f0] sm:$0xff] %v274
  %339 = vst [vmem:[%s2 + $0x1f8] sm:$0xff] %v275
  // Predicated region
  $region10: #{unet_conv2_forward.5} parent=0 // pred_check
    _
  $region11: #{unet_conv2_forward.5} parent=0 // pred_check_branch
    %341 = sbr.rel (0) target = $region13
  $region12: #{unet_conv2_forward.5} parent=0 // pred_region
    _
  $region13: #{unet_conv2_forward.5} parent=0 // pred_fallthru
    _
  // Predicated region
  $region14: #{unet_conv2_forward.5} parent=0 // pred_check
    _
  $region15: #{unet_conv2_forward.5} parent=0 // pred_check_branch
    %343 = sbr.rel (0) target = $region17
  $region16: #{unet_conv2_forward.5} parent=0 // pred_region
    _
  $region17: #{unet_conv2_forward.5} parent=0 // pred_fallthru
    _

// kernel: unet_conv2_forward.4
$region0: #{unet_conv2_forward.4}
  #allocation0 [shape = 'u32[]', space=smem, size = 0x4, offset = 0x4, fixed_abs, tag = 'smem constant byte address 0x4 - core index']
  #allocation1 [shape = 'u32[144,128]{1,0:T(1,128)}', space=vmem, size = 0x12000, scoped, tag = 'internal scratch']
  %s0 = inlined_call_operand.vmem [shape: f32[4,10,18,128], index: 0, kind: input, shape index: {}]
  %s1 = inlined_call_operand.vmem [shape: f32[9,128,128], index: 1, kind: input, shape index: {}]
  %s2 = inlined_call_operand.vmem [shape: f32[4,8,16,128], index: 2, kind: output, shape index: {0}]
  %s3 = inlined_call_operand.vmem [shape: f32[4,8,128], index: 3, kind: output, shape index: {1}]
  %s4 = inlined_call_operand.vmem [shape: f32[4,8,128], index: 4, kind: output, shape index: {2}]
  %5 = xla_tuple %s2, %s3, %s4
  %s6 = sld [smem:[#allocation0]]
  $region57: #{unet_conv2_forward.4} parent=0
    _
  %s8 = ssub.s32 1, %s6
  %s9 = scalar_select 0, %s8, %s6
  loop: start=0, step=1, limit=6
  $region2: #{unet_conv2_forward.4} parent=0 // loop_pre_header
    _
  $region3: #{unet_conv2_forward.4} parent=0 // loop_header
    %s11 = sphi 0, %s15
    %p12 = scmp.ge.s32.totalorder %s11, 6
    %s21 = sphi 0, %s23
    %s24 = sphi 0, %s21
    %s25 = sphi 0, %s24
    %s41 = sphi 0, %s25
    %s45 = sphi 0, %s45
    %s47 = sphi 0, %s45
    %s48 = sphi 0, %s47
    %s62 = sphi 0, %s48
    %s68 = sphi 0, %s70
    %s71 = sphi 0, %s68
    %s72 = sphi 0, %s71
    %s88 = sphi 0, %s72
    %s94 = sphi 0, %s96
    %s97 = sphi 0, %s94
    %s98 = sphi 0, %s97
    %s114 = sphi 0, %s98
    %s120 = sphi 0, %s122
    %s123 = sphi 0, %s120
    %s124 = sphi 0, %s123
    %s140 = sphi 0, %s124
  $region4: #{unet_conv2_forward.4} parent=0 // loop_header_branch
    %14 = sbr.rel (%p12) target = $region8
  $region5: #{unet_conv2_forward.4} parent=0 // loop_body
    %s16 = ssub.s32 %s11, 1
    %s17 = ssub.s32 %s11, 2
    %s18 = sadd.s32 %s11, 1
    %s19 = ssub.s32 %s11, %s18
    %p20 = scmp.eq.s32.totalorder %s19, 0
    %s22 = sadd.s32 %s21, 1
    %s23 = scalar_select %p20, %s21, %s22
    %p26 = pneg %p20
    %p27 = scmp.eq.s32.totalorder %s11, 3
    %p28 = por %p26, %p27
    %p29 = scmp.ne.s32.totalorder %s21, %s24
    %p30 = scmp.eq.s32.totalorder %s11, 0
    %p31 = por %p29, %p30
    %p32 = scmp.ne.s32.totalorder %s21, %s24
    %p33 = scmp.eq.s32.totalorder %s16, 3
    %p34 = por %p32, %p33
    %p35 = scmp.ne.s32.totalorder %s24, %s25
    %p36 = scmp.eq.s32.totalorder %s16, 0
    %p37 = por %p35, %p36
    %p38 = scmp.ne.s32.totalorder %s24, %s25
    %p39 = scmp.eq.s32.totalorder %s17, 3
    %p40 = por %p38, %p39
    %p42 = scmp.ne.s32.totalorder %s25, %s41
    %p43 = scmp.eq.s32.totalorder %s17, 0
    %p44 = por %p42, %p43
    %s46 = sadd.s32 %s45, 1
    %p49 = scmp.eq.s32.totalorder %s11, 3
    %p50 = scmp.ne.s32.totalorder %s45, %s47
    %p51 = scmp.eq.s32.totalorder %s11, 0
    %p52 = por %p50, %p51
    %p53 = scmp.ne.s32.totalorder %s45, %s47
    %p54 = scmp.eq.s32.totalorder %s16, 3
    %p55 = por %p53, %p54
    %p56 = scmp.ne.s32.totalorder %s47, %s48
    %p57 = scmp.eq.s32.totalorder %s16, 0
    %p58 = por %p56, %p57
    %p59 = scmp.ne.s32.totalorder %s47, %s48
    %p60 = scmp.eq.s32.totalorder %s17, 3
    %p61 = por %p59, %p60
    %p63 = scmp.ne.s32.totalorder %s48, %s62
    %p64 = scmp.eq.s32.totalorder %s17, 0
    %p65 = por %p63, %p64
    %s66 = ssub.s32 %s11, %s18
    %p67 = scmp.eq.s32.totalorder %s66, 0
    %s69 = sadd.s32 %s68, 1
    %s70 = scalar_select %p67, %s68, %s69
    %p73 = pneg %p67
    %p74 = scmp.eq.s32.totalorder %s11, 3
    %p75 = por %p73, %p74
    %p76 = scmp.ne.s32.totalorder %s68, %s71
    %p77 = scmp.eq.s32.totalorder %s11, 0
    %p78 = por %p76, %p77
    %p79 = scmp.ne.s32.totalorder %s68, %s71
    %p80 = scmp.eq.s32.totalorder %s16, 3
    %p81 = por %p79, %p80
    %p82 = scmp.ne.s32.totalorder %s71, %s72
    %p83 = scmp.eq.s32.totalorder %s16, 0
    %p84 = por %p82, %p83
    %p85 = scmp.ne.s32.totalorder %s71, %s72
    %p86 = scmp.eq.s32.totalorder %s17, 3
    %p87 = por %p85, %p86
    %p89 = scmp.ne.s32.totalorder %s72, %s88
    %p90 = scmp.eq.s32.totalorder %s17, 0
    %p91 = por %p89, %p90
    %s92 = ssub.s32 %s11, %s18
    %p93 = scmp.eq.s32.totalorder %s92, 0
    %s95 = sadd.s32 %s94, 1
    %s96 = scalar_select %p93, %s94, %s95
    %p99 = pneg %p93
    %p100 = scmp.eq.s32.totalorder %s11, 3
    %p101 = por %p99, %p100
    %p102 = scmp.ne.s32.totalorder %s94, %s97
    %p103 = scmp.eq.s32.totalorder %s11, 0
    %p104 = por %p102, %p103
    %p105 = scmp.ne.s32.totalorder %s94, %s97
    %p106 = scmp.eq.s32.totalorder %s16, 3
    %p107 = por %p105, %p106
    %p108 = scmp.ne.s32.totalorder %s97, %s98
    %p109 = scmp.eq.s32.totalorder %s16, 0
    %p110 = por %p108, %p109
    %p111 = scmp.ne.s32.totalorder %s97, %s98
    %p112 = scmp.eq.s32.totalorder %s17, 3
    %p113 = por %p111, %p112
    %p115 = scmp.ne.s32.totalorder %s98, %s114
    %p116 = scmp.eq.s32.totalorder %s17, 0
    %p117 = por %p115, %p116
    %s118 = ssub.s32 %s11, %s18
    %p119 = scmp.eq.s32.totalorder %s118, 0
    %s121 = sadd.s32 %s120, 1
    %s122 = scalar_select %p119, %s120, %s121
    %p125 = pneg %p119
    %p126 = scmp.eq.s32.totalorder %s11, 3
    %p127 = por %p125, %p126
    %p128 = scmp.ne.s32.totalorder %s120, %s123
    %p129 = scmp.eq.s32.totalorder %s11, 0
    %p130 = por %p128, %p129
    %p131 = scmp.ne.s32.totalorder %s120, %s123
    %p132 = scmp.eq.s32.totalorder %s16, 3
    %p133 = por %p131, %p132
    %p134 = scmp.ne.s32.totalorder %s123, %s124
    %p135 = scmp.eq.s32.totalorder %s16, 0
    %p136 = por %p134, %p135
    %p137 = scmp.ne.s32.totalorder %s123, %s124
    %p138 = scmp.eq.s32.totalorder %s17, 3
    %p139 = por %p137, %p138
    %p141 = scmp.ne.s32.totalorder %s124, %s140
    %p142 = scmp.eq.s32.totalorder %s17, 0
    %p143 = por %p141, %p142
    %p144 = scmp.le.s32.totalorder 1, %s11
    %p145 = scmp.lt.s32.totalorder %s11, 5
    %p146 = pnand %p144, %p145
    %p147 = pneg %p146
    // Predicated region
    $region9: #{unet_conv2_forward.4} parent=5 // pred_check
      _
    $region10: #{unet_conv2_forward.4} parent=5 // pred_check_branch
      %149 = sbr.rel (%p146) target = $region12
    $region11: #{unet_conv2_forward.4} parent=5 // pred_region
      %s150 = ssub.s32 %s11, 1
      // Predicated region
      $region13: #{unet_conv2_forward.4} parent=11 // pred_check
        %p151 = pneg %p58
      $region14: #{unet_conv2_forward.4} parent=11 // pred_check_branch
        %153 = sbr.rel (%p151) target = $region16
      $region15: #{unet_conv2_forward.4} parent=11 // pred_region
        _
      $region16: #{unet_conv2_forward.4} parent=11 // pred_fallthru
        _
    $region12: #{unet_conv2_forward.4} parent=5 // pred_fallthru
      _
    %p154 = scmp.lt.s32.totalorder %s11, 4
    // Predicated region
    $region17: #{unet_conv2_forward.4} parent=5 // pred_check
      %p155 = pneg %p154
    $region18: #{unet_conv2_forward.4} parent=5 // pred_check_branch
      %157 = sbr.rel (%p155) target = $region20
    $region19: #{unet_conv2_forward.4} parent=5 // pred_region
      // Predicated region
      $region21: #{unet_conv2_forward.4} parent=19 // pred_check
        %p158 = pneg %p31
      $region22: #{unet_conv2_forward.4} parent=19 // pred_check_branch
        %160 = sbr.rel (%p158) target = $region24
      $region23: #{unet_conv2_forward.4} parent=19 // pred_region
        %p161 = scmp.lt.s32.totalorder %s11, 3
        %s162 = scalar_select %p161, %s11, 3
        %s163 = smul.addr %s162, 30
        %s164 = smul.addr %s163, 8
        %s165 = scalar_lea.vmem %s0, %s164
      $region24: #{unet_conv2_forward.4} parent=19 // pred_fallthru
        _
    $region20: #{unet_conv2_forward.4} parent=5 // pred_fallthru
      _
    %p166 = scmp.le.s32.totalorder 1, %s11
    %p167 = scmp.lt.s32.totalorder %s11, 5
    %p168 = pnand %p166, %p167
    %p169 = pneg %p168
    // Predicated region
    $region25: #{unet_conv2_forward.4} parent=5 // pred_check
      _
    $region26: #{unet_conv2_forward.4} parent=5 // pred_check_branch
      %171 = sbr.rel (%p168) target = $region28
    $region27: #{unet_conv2_forward.4} parent=5 // pred_region
      %s172 = ssub.s32 %s11, 1
      %p173 = scmp.lt.s32.totalorder %s16, 3
      %s174 = scalar_select %p173, %s16, 3
      %s175 = smul.addr %s174, 30
      %s176 = smul.addr %s175, 8
      %s177 = scalar_lea.vmem %s0, %s176
      %p178 = pneg %p37
      %p179 = pneg %p34
      %p180 = pneg %p58
      %p181 = pneg %p55
      %p182 = pneg %p84
      %p183 = pneg %p81
      %p184 = scmp.lt.s32.totalorder %s16, 3
      %s185 = scalar_select %p184, %s16, 3
      %s186 = smul.addr %s185, 16
      %s187 = smul.addr %s186, 8
      %s188 = scalar_lea.vmem %s2, %s187
      %p189 = pneg %p110
      %p190 = pneg %p107
      %p191 = scmp.lt.s32.totalorder %s16, 3
      %s192 = scalar_select %p191, %s16, 3
      %s193 = smul.addr %s192, 8
      %s194 = scalar_lea.vmem %s3, %s193
      %p195 = pneg %p136
      %p196 = pneg %p133
      %p197 = scmp.lt.s32.totalorder %s16, 3
      %s198 = scalar_select %p197, %s16, 3
      %s199 = smul.addr %s198, 8
      %s200 = scalar_lea.vmem %s4, %s199
      %p201 = scmp.lt.s32.totalorder %s16, 3
      %s202 = scalar_select %p201, %s16, 3
      %s203 = smul.addr %s202, 30
      %s204 = smul.addr %s203, 8
      %s205 = scalar_lea.vmem %s0, %s204
      %p206 = scmp.lt.s32.totalorder %s16, 3
      %s207 = scalar_select %p206, %s16, 3
      %s208 = smul.addr %s207, 16
      %s209 = smul.addr %s208, 8
      %s210 = scalar_lea.vmem %s2, %s209
      %p211 = scmp.lt.s32.totalorder %s16, 3
      %s212 = scalar_select %p211, %s16, 3
      %s213 = smul.addr %s212, 8
      %s214 = scalar_lea.vmem %s3, %s213
      %p215 = scmp.lt.s32.totalorder %s16, 3
      %s216 = scalar_select %p215, %s16, 3
      %s217 = smul.addr %s216, 8
      %s218 = scalar_lea.vmem %s4, %s217
      %v219 = vld [vmem:[%s205] sm:$0xff]
      %v220 = vld [vmem:[%s205 + $0x8] sm:$0xff]
      %v221 = vld [vmem:[%s205 + $0x10] sm:$0x3]
      %v222 = vld [vmem:[%s205 + $0x18] sm:$0xff]
      %v223 = vld [vmem:[%s205 + $0x20] sm:$0xff]
      %v224 = vld [vmem:[%s205 + $0x28] sm:$0x3]
      %v225 = vld [vmem:[%s205 + $0x30] sm:$0xff]
      %v226 = vld [vmem:[%s205 + $0x38] sm:$0xff]
      %v227 = vld [vmem:[%s205 + $0x40] sm:$0x3]
      %v228 = vld [vmem:[%s205 + $0x48] sm:$0xff]
      %v229 = vld [vmem:[%s205 + $0x50] sm:$0xff]
      %v230 = vld [vmem:[%s205 + $0x58] sm:$0x3]
      %v231 = vld [vmem:[%s205 + $0x60] sm:$0xff]
      %v232 = vld [vmem:[%s205 + $0x68] sm:$0xff]
      %v233 = vld [vmem:[%s205 + $0x70] sm:$0x3]
      %v234 = vld [vmem:[%s205 + $0x78] sm:$0xff]
      %v235 = vld [vmem:[%s205 + $0x80] sm:$0xff]
      %v236 = vld [vmem:[%s205 + $0x88] sm:$0x3]
      %v237 = vld [vmem:[%s205 + $0x90] sm:$0xff]
      %v238 = vld [vmem:[%s205 + $0x98] sm:$0xff]
      %v239 = vld [vmem:[%s205 + $0xa0] sm:$0x3]
      %v240 = vld [vmem:[%s205 + $0xa8] sm:$0xff]
      %v241 = vld [vmem:[%s205 + $0xb0] sm:$0xff]
      %v242 = vld [vmem:[%s205 + $0xb8] sm:$0x3]
      %v243 = vld [vmem:[%s205 + $0xc0] sm:$0xff]
      %v244 = vld [vmem:[%s205 + $0xc8] sm:$0xff]
      %v245 = vld [vmem:[%s205 + $0xd0] sm:$0x3]
      %v246 = vld [vmem:[%s205 + $0xd8] sm:$0xff]
      %v247 = vld [vmem:[%s205 + $0xe0] sm:$0xff]
      %v248 = vld [vmem:[%s205 + $0xe8] sm:$0x3]
      %v249 = vld [vmem:[%s1] sm:$0xff]
      %v250 = vld [vmem:[%s1 + $0x8] sm:$0xff]
      %v251 = vld [vmem:[%s1 + $0x10] sm:$0xff]
      %v252 = vld [vmem:[%s1 + $0x18] sm:$0xff]
      %v253 = vld [vmem:[%s1 + $0x20] sm:$0xff]
      %v254 = vld [vmem:[%s1 + $0x28] sm:$0xff]
      %v255 = vld [vmem:[%s1 + $0x30] sm:$0xff]
      %v256 = vld [vmem:[%s1 + $0x38] sm:$0xff]
      %v257 = vld [vmem:[%s1 + $0x40] sm:$0xff]
      %v258 = vld [vmem:[%s1 + $0x48] sm:$0xff]
      %v259 = vld [vmem:[%s1 + $0x50] sm:$0xff]
      %v260 = vld [vmem:[%s1 + $0x58] sm:$0xff]
      %v261 = vld [vmem:[%s1 + $0x60] sm:$0xff]
      %v262 = vld [vmem:[%s1 + $0x68] sm:$0xff]
      %v263 = vld [vmem:[%s1 + $0x70] sm:$0xff]
      %v264 = vld [vmem:[%s1 + $0x78] sm:$0xff]
      %vm289 = vcmask 1046528
      %v290 = vrot.slane %v219, 1
      %v291 = vrot.slane %v220, 1
      %v292 = vsel %vm289, %v290, %v291
      %v293 = vrot.slane %v221, 1
      %v294 = vsel %vm289, %v291, %v293
      %v295 = vrot.slane %v222, 1
      %v296 = vrot.slane %v223, 1
      %v297 = vsel %vm289, %v295, %v296
      %v298 = vrot.slane %v224, 1
      %v299 = vsel %vm289, %v296, %v298
      %v300 = vrot.slane %v225, 1
      %v301 = vrot.slane %v226, 1
      %v302 = vsel %vm289, %v300, %v301
      %v303 = vrot.slane %v227, 1
      %v304 = vsel %vm289, %v301, %v303
      %v305 = vrot.slane %v228, 1
      %v306 = vrot.slane %v229, 1
      %v307 = vsel %vm289, %v305, %v306
      %v308 = vrot.slane %v230, 1
      %v309 = vsel %vm289, %v306, %v308
      %v310 = vrot.slane %v231, 1
      %v311 = vrot.slane %v232, 1
      %v312 = vsel %vm289, %v310, %v311
      %v313 = vrot.slane %v233, 1
      %v314 = vsel %vm289, %v311, %v313
      %v315 = vrot.slane %v234, 1
      %v316 = vrot.slane %v235, 1
      %v317 = vsel %vm289, %v315, %v316
      %v318 = vrot.slane %v236, 1
      %v319 = vsel %vm289, %v316, %v318
      %v320 = vrot.slane %v237, 1
      %v321 = vrot.slane %v238, 1
      %v322 = vsel %vm289, %v320, %v321
      %v323 = vrot.slane %v239, 1
      %v324 = vsel %vm289, %v321, %v323
      %v325 = vrot.slane %v240, 1
      %v326 = vrot.slane %v241, 1
      %v327 = vsel %vm289, %v325, %v326
      %v328 = vrot.slane %v242, 1
      %v329 = vsel %vm289, %v326, %v328
      %s346 = scalar_lea.vmem %s1, 128
      %v347 = vld [vmem:[%s346] sm:$0xff]
      %v348 = vld [vmem:[%s346 + $0x8] sm:$0xff]
      %v349 = vld [vmem:[%s346 + $0x10] sm:$0xff]
      %v350 = vld [vmem:[%s346 + $0x18] sm:$0xff]
      %v351 = vld [vmem:[%s346 + $0x20] sm:$0xff]
      %v352 = vld [vmem:[%s346 + $0x28] sm:$0xff]
      %v353 = vld [vmem:[%s346 + $0x30] sm:$0xff]
      %v354 = vld [vmem:[%s346 + $0x38] sm:$0xff]
      %v355 = vld [vmem:[%s346 + $0x40] sm:$0xff]
      %v356 = vld [vmem:[%s346 + $0x48] sm:$0xff]
      %v357 = vld [vmem:[%s346 + $0x50] sm:$0xff]
      %v358 = vld [vmem:[%s346 + $0x58] sm:$0xff]
      %v359 = vld [vmem:[%s346 + $0x60] sm:$0xff]
      %v360 = vld [vmem:[%s346 + $0x68] sm:$0xff]
      %v361 = vld [vmem:[%s346 + $0x70] sm:$0xff]
      %v362 = vld [vmem:[%s346 + $0x78] sm:$0xff]
      %363 = vmatprep.subr.mxu0 0.0
      %364 = vmatpush1.msra.mxu0 %v362
      %365 = vmatprep.subr.mxu0 0.0
      %366 = vmatpush1.msra.mxu0 %v361
      %367 = vmatprep.subr.mxu0 0.0
      %368 = vmatpush1.msra.mxu0 %v360
      %369 = vmatprep.subr.mxu0 0.0
      %370 = vmatpush1.msra.mxu0 %v359
      %371 = vmatprep.subr.mxu0 0.0
      %372 = vmatpush1.msra.mxu0 %v358
      %373 = vmatprep.subr.mxu0 0.0
      %374 = vmatpush1.msra.mxu0 %v357
      %375 = vmatprep.subr.mxu0 0.0
      %376 = vmatpush1.msra.mxu0 %v356
      %377 = vmatprep.subr.mxu0 0.0
      %378 = vmatpush1.msra.mxu0 %v355
      %379 = vmatprep.subr.mxu0 0.0
      %380 = vmatpush1.msra.mxu0 %v354
      %381 = vmatprep.subr.mxu0 0.0
      %382 = vmatpush1.msra.mxu0 %v353
      %383 = vmatprep.subr.mxu0 0.0
      %384 = vmatpush1.msra.mxu0 %v352
      %385 = vmatprep.subr.mxu0 0.0
      %386 = vmatpush1.msra.mxu0 %v351
      %387 = vmatprep.subr.mxu0 0.0
      %388 = vmatpush1.msra.mxu0 %v350
      %389 = vmatprep.subr.mxu0 0.0
      %390 = vmatpush1.msra.mxu0 %v349
      %391 = vmatprep.subr.mxu0 0.0
      %392 = vmatpush1.msra.mxu0 %v348
      %393 = vmatprep.subr.mxu0 0.0
      %394 = vmatpush1.msra.mxu0 %v347
      %395 = vmatprep.subr.mxu0 0.0
      %396 = vmatpush2.msra.mxu0 0.0
      %397 = vmatprep.subr.mxu0 0.0
      %398 = vmatpush2.msra.mxu0 0.0
      %399 = vmatprep.subr.mxu0 0.0
      %400 = vmatpush2.msra.mxu0 0.0
      %401 = vmatprep.subr.mxu0 0.0
      %402 = vmatpush2.msra.mxu0 0.0
      %403 = vmatprep.subr.mxu0 0.0
      %404 = vmatpush2.msra.mxu0 0.0
      %405 = vmatprep.subr.mxu0 0.0
      %406 = vmatpush2.msra.mxu0 0.0
      %407 = vmatprep.subr.mxu0 0.0
      %408 = vmatpush2.msra.mxu0 0.0
      %409 = vmatprep.subr.mxu0 0.0
      %410 = vmatpush2.msra.mxu0 0.0
      %411 = vmatprep.subr.mxu0 0.0
      %412 = vmatpush2.msra.mxu0 0.0
      %413 = vmatprep.subr.mxu0 0.0
      %414 = vmatpush2.msra.mxu0 0.0
      %415 = vmatprep.subr.mxu0 0.0
      %416 = vmatpush2.msra.mxu0 0.0
      %417 = vmatprep.subr.mxu0 0.0
      %418 = vmatpush2.msra.mxu0 0.0
      %419 = vmatprep.subr.mxu0 0.0
      %420 = vmatpush2.msra.mxu0 0.0
      %421 = vmatprep.subr.mxu0 0.0
      %422 = vmatpush2.msra.mxu0 0.0
      %423 = vmatprep.subr.mxu0 0.0
      %424 = vmatpush2.msra.mxu0 0.0
      %425 = vmatprep.subr.mxu0 0.0
      %426 = vmatpush2.msra.mxu0 0.0
      %427 = vmatprep.mubr.f32.mxu0 0.0
      %428 = vmatmul.mubr.f32.gmra.mxu0 %v292
      %v429 = vpop.f32.mrf.mxu0
      %v430 = vadd.f32 0.0, %v429
      %v431 = vpop.f32.mrf.mxu0
      %432 = vmatprep.mubr.f32.mxu0 0.0
      %433 = vmatmul.mubr.f32.gmra.mxu0 %v294
      %v434 = vpop.f32.mrf.mxu0
      %v435 = vadd.f32 0.0, %v434
      %v436 = vpop.f32.mrf.mxu0
      %437 = vmatprep.mubr.f32.mxu0 0.0
      %438 = vmatmul.mubr.f32.gmra.mxu0 %v297
      %v439 = vpop.f32.mrf.mxu0
      %v440 = vadd.f32 0.0, %v439
      %v441 = vpop.f32.mrf.mxu0
      %442 = vmatprep.mubr.f32.mxu0 0.0
      %443 = vmatmul.mubr.f32.gmra.mxu0 %v299
      %v444 = vpop.f32.mrf.mxu0
      %v445 = vadd.f32 0.0, %v444
      %v446 = vpop.f32.mrf.mxu0
      %447 = vmatprep.mubr.f32.mxu0 0.0
      %448 = vmatmul.mubr.f32.gmra.mxu0 %v302
      %v449 = vpop.f32.mrf.mxu0
      %v450 = vadd.f32 0.0, %v449
      %v451 = vpop.f32.mrf.mxu0
      %452 = vmatprep.mubr.f32.mxu0 0.0
      %453 = vmatmul.mubr.f32.gmra.mxu0 %v304
      %v454 = vpop.f32.mrf.mxu0
      %v455 = vadd.f32 0.0, %v454
      %v456 = vpop.f32.mrf.mxu0
      %457 = vmatprep.mubr.f32.mxu0 0.0
      %458 = vmatmul.mubr.f32.gmra.mxu0 %v307
      %v459 = vpop.f32.mrf.mxu0
      %v460 = vadd.f32 0.0, %v459
      %v461 = vpop.f32.mrf.mxu0
      %462 = vmatprep.mubr.f32.mxu0 0.0
      %463 = vmatmul.mubr.f32.gmra.mxu0 %v309
      %v464 = vpop.f32.mrf.mxu0
      %v465 = vadd.f32 0.0, %v464
      %v466 = vpop.f32.mrf.mxu0
      %467 = vmatprep.mubr.f32.mxu0 0.0
      %468 = vmatmul.mubr.f32.gmra.mxu0 %v312
      %v469 = vpop.f32.mrf.mxu0
      %v470 = vadd.f32 0.0, %v469
      %v471 = vpop.f32.mrf.mxu0
      %472 = vmatprep.mubr.f32.mxu0 0.0
      %473 = vmatmul.mubr.f32.gmra.mxu0 %v314
      %v474 = vpop.f32.mrf.mxu0
      %v475 = vadd.f32 0.0, %v474
      %v476 = vpop.f32.mrf.mxu0
      %477 = vmatprep.mubr.f32.mxu0 0.0
      %478 = vmatmul.mubr.f32.gmra.mxu0 %v317
      %v479 = vpop.f32.mrf.mxu0
      %v480 = vadd.f32 0.0, %v479
      %v481 = vpop.f32.mrf.mxu0
      %482 = vmatprep.mubr.f32.mxu0 0.0
      %483 = vmatmul.mubr.f32.gmra.mxu0 %v319
      %v484 = vpop.f32.mrf.mxu0
      %v485 = vadd.f32 0.0, %v484
      %v486 = vpop.f32.mrf.mxu0
      %487 = vmatprep.mubr.f32.mxu0 0.0
      %488 = vmatmul.mubr.f32.gmra.mxu0 %v322
      %v489 = vpop.f32.mrf.mxu0
      %v490 = vadd.f32 0.0, %v489
      %v491 = vpop.f32.mrf.mxu0
      %492 = vmatprep.mubr.f32.mxu0 0.0
      %493 = vmatmul.mubr.f32.gmra.mxu0 %v324
      %v494 = vpop.f32.mrf.mxu0
      %v495 = vadd.f32 0.0, %v494
      %v496 = vpop.f32.mrf.mxu0
      %497 = vmatprep.mubr.f32.mxu0 0.0
      %498 = vmatmul.mubr.f32.gmra.mxu0 %v327
      %v499 = vpop.f32.mrf.mxu0
      %v500 = vadd.f32 0.0, %v499
      %v501 = vpop.f32.mrf.mxu0
      %502 = vmatprep.mubr.f32.mxu0 0.0
      %503 = vmatmul.mubr.f32.gmra.mxu0 %v329
      %v504 = vpop.f32.mrf.mxu0
      %v505 = vadd.f32 0.0, %v504
      %v506 = vpop.f32.mrf.mxu0
      %507 = vdwg.mxu0
      %508 = vmatprep.subr.mxu0 0.0
      %509 = vmatpush1.msra.mxu0 %v264
      %510 = vmatprep.subr.mxu0 0.0
      %511 = vmatpush1.msra.mxu0 %v263
      %512 = vmatprep.subr.mxu0 0.0
      %513 = vmatpush1.msra.mxu0 %v262
      %514 = vmatprep.subr.mxu0 0.0
      %515 = vmatpush1.msra.mxu0 %v261
      %516 = vmatprep.subr.mxu0 0.0
      %517 = vmatpush1.msra.mxu0 %v260
      %518 = vmatprep.subr.mxu0 0.0
      %519 = vmatpush1.msra.mxu0 %v259
      %520 = vmatprep.subr.mxu0 0.0
      %521 = vmatpush1.msra.mxu0 %v258
      %522 = vmatprep.subr.mxu0 0.0
      %523 = vmatpush1.msra.mxu0 %v257
      %524 = vmatprep.subr.mxu0 0.0
      %525 = vmatpush1.msra.mxu0 %v256
      %526 = vmatprep.subr.mxu0 0.0
      %527 = vmatpush1.msra.mxu0 %v255
      %528 = vmatprep.subr.mxu0 0.0
      %529 = vmatpush1.msra.mxu0 %v254
      %530 = vmatprep.subr.mxu0 0.0
      %531 = vmatpush1.msra.mxu0 %v253
      %532 = vmatprep.subr.mxu0 0.0
      %533 = vmatpush1.msra.mxu0 %v252
      %534 = vmatprep.subr.mxu0 0.0
      %535 = vmatpush1.msra.mxu0 %v251
      %536 = vmatprep.subr.mxu0 0.0
      %537 = vmatpush1.msra.mxu0 %v250
      %538 = vmatprep.subr.mxu0 0.0
      %539 = vmatpush1.msra.mxu0 %v249
      %540 = vmatprep.subr.mxu0 0.0
      %541 = vmatpush2.msra.mxu0 0.0
      %542 = vmatprep.subr.mxu0 0.0
      %543 = vmatpush2.msra.mxu0 0.0
      %544 = vmatprep.subr.mxu0 0.0
      %545 = vmatpush2.msra.mxu0 0.0
      %546 = vmatprep.subr.mxu0 0.0
      %547 = vmatpush2.msra.mxu0 0.0
      %548 = vmatprep.subr.mxu0 0.0
      %549 = vmatpush2.msra.mxu0 0.0
      %550 = vmatprep.subr.mxu0 0.0
      %551 = vmatpush2.msra.mxu0 0.0
      %552 = vmatprep.subr.mxu0 0.0
      %553 = vmatpush2.msra.mxu0 0.0
      %554 = vmatprep.subr.mxu0 0.0
      %555 = vmatpush2.msra.mxu0 0.0
      %556 = vmatprep.subr.mxu0 0.0
      %557 = vmatpush2.msra.mxu0 0.0
      %558 = vmatprep.subr.mxu0 0.0
      %559 = vmatpush2.msra.mxu0 0.0
      %560 = vmatprep.subr.mxu0 0.0
      %561 = vmatpush2.msra.mxu0 0.0
      %562 = vmatprep.subr.mxu0 0.0
      %563 = vmatpush2.msra.mxu0 0.0
      %564 = vmatprep.subr.mxu0 0.0
      %565 = vmatpush2.msra.mxu0 0.0
      %566 = vmatprep.subr.mxu0 0.0
      %567 = vmatpush2.msra.mxu0 0.0
      %568 = vmatprep.subr.mxu0 0.0
      %569 = vmatpush2.msra.mxu0 0.0
      %570 = vmatprep.subr.mxu0 0.0
      %571 = vmatpush2.msra.mxu0 0.0
      %572 = vmatprep.mubr.f32.mxu0 0.0
      %573 = vmatmul.mubr.f32.gmra.mxu0 %v219
      %v574 = vpop.f32.mrf.mxu0
      %v575 = vadd.f32 %v430, %v574
      %v576 = vpop.f32.mrf.mxu0
      %577 = vmatprep.mubr.f32.mxu0 0.0
      %578 = vmatmul.mubr.f32.gmra.mxu0 %v220
      %v579 = vpop.f32.mrf.mxu0
      %v580 = vadd.f32 %v435, %v579
      %v581 = vpop.f32.mrf.mxu0
      %582 = vmatprep.mubr.f32.mxu0 0.0
      %583 = vmatmul.mubr.f32.gmra.mxu0 %v222
      %v584 = vpop.f32.mrf.mxu0
      %v585 = vadd.f32 %v440, %v584
      %v586 = vpop.f32.mrf.mxu0
      %587 = vmatprep.mubr.f32.mxu0 0.0
      %588 = vmatmul.mubr.f32.gmra.mxu0 %v223
      %v589 = vpop.f32.mrf.mxu0
      %v590 = vadd.f32 %v445, %v589
      %v591 = vpop.f32.mrf.mxu0
      %592 = vmatprep.mubr.f32.mxu0 0.0
      %593 = vmatmul.mubr.f32.gmra.mxu0 %v225
      %v594 = vpop.f32.mrf.mxu0
      %v595 = vadd.f32 %v450, %v594
      %v596 = vpop.f32.mrf.mxu0
      %597 = vmatprep.mubr.f32.mxu0 0.0
      %598 = vmatmul.mubr.f32.gmra.mxu0 %v226
      %v599 = vpop.f32.mrf.mxu0
      %v600 = vadd.f32 %v455, %v599
      %v601 = vpop.f32.mrf.mxu0
      %602 = vmatprep.mubr.f32.mxu0 0.0
      %603 = vmatmul.mubr.f32.gmra.mxu0 %v228
      %v604 = vpop.f32.mrf.mxu0
      %v605 = vadd.f32 %v460, %v604
      %v606 = vpop.f32.mrf.mxu0
      %607 = vmatprep.mubr.f32.mxu0 0.0
      %608 = vmatmul.mubr.f32.gmra.mxu0 %v229
      %v609 = vpop.f32.mrf.mxu0
      %v610 = vadd.f32 %v465, %v609
      %v611 = vpop.f32.mrf.mxu0
      %612 = vmatprep.mubr.f32.mxu0 0.0
      %613 = vmatmul.mubr.f32.gmra.mxu0 %v231
      %v614 = vpop.f32.mrf.mxu0
      %v615 = vadd.f32 %v470, %v614
      %v616 = vpop.f32.mrf.mxu0
      %617 = vmatprep.mubr.f32.mxu0 0.0
      %618 = vmatmul.mubr.f32.gmra.mxu0 %v232
      %v619 = vpop.f32.mrf.mxu0
      %v620 = vadd.f32 %v475, %v619
      %v621 = vpop.f32.mrf.mxu0
      %622 = vmatprep.mubr.f32.mxu0 0.0
      %623 = vmatmul.mubr.f32.gmra.mxu0 %v234
      %v624 = vpop.f32.mrf.mxu0
      %v625 = vadd.f32 %v480, %v624
      %v626 = vpop.f32.mrf.mxu0
      %627 = vmatprep.mubr.f32.mxu0 0.0
      %628 = vmatmul.mubr.f32.gmra.mxu0 %v235
      %v629 = vpop.f32.mrf.mxu0
      %v630 = vadd.f32 %v485, %v629
      %v631 = vpop.f32.mrf.mxu0
      %632 = vmatprep.mubr.f32.mxu0 0.0
      %633 = vmatmul.mubr.f32.gmra.mxu0 %v237
      %v634 = vpop.f32.mrf.mxu0
      %v635 = vadd.f32 %v490, %v634
      %v636 = vpop.f32.mrf.mxu0
      %637 = vmatprep.mubr.f32.mxu0 0.0
      %638 = vmatmul.mubr.f32.gmra.mxu0 %v238
      %v639 = vpop.f32.mrf.mxu0
      %v640 = vadd.f32 %v495, %v639
      %v641 = vpop.f32.mrf.mxu0
      %642 = vmatprep.mubr.f32.mxu0 0.0
      %643 = vmatmul.mubr.f32.gmra.mxu0 %v240
      %v644 = vpop.f32.mrf.mxu0
      %v645 = vadd.f32 %v500, %v644
      %v646 = vpop.f32.mrf.mxu0
      %647 = vmatprep.mubr.f32.mxu0 0.0
      %648 = vmatmul.mubr.f32.gmra.mxu0 %v241
      %v649 = vpop.f32.mrf.mxu0
      %v650 = vadd.f32 %v505, %v649
      %v651 = vpop.f32.mrf.mxu0
      %652 = vdwg.mxu0
      %vm653 = vcmask 1045504
      %v654 = vrot.slane %v219, 2
      %v655 = vrot.slane %v220, 2
      %v656 = vsel %vm653, %v654, %v655
      %v657 = vrot.slane %v221, 2
      %v658 = vsel %vm653, %v655, %v657
      %v659 = vrot.slane %v222, 2
      %v660 = vrot.slane %v223, 2
      %v661 = vsel %vm653, %v659, %v660
      %v662 = vrot.slane %v224, 2
      %v663 = vsel %vm653, %v660, %v662
      %v664 = vrot.slane %v225, 2
      %v665 = vrot.slane %v226, 2
      %v666 = vsel %vm653, %v664, %v665
      %v667 = vrot.slane %v227, 2
      %v668 = vsel %vm653, %v665, %v667
      %v669 = vrot.slane %v228, 2
      %v670 = vrot.slane %v229, 2
      %v671 = vsel %vm653, %v669, %v670
      %v672 = vrot.slane %v230, 2
      %v673 = vsel %vm653, %v670, %v672
      %v674 = vrot.slane %v231, 2
      %v675 = vrot.slane %v232, 2
      %v676 = vsel %vm653, %v674, %v675
      %v677 = vrot.slane %v233, 2
      %v678 = vsel %vm653, %v675, %v677
      %v679 = vrot.slane %v234, 2
      %v680 = vrot.slane %v235, 2
      %v681 = vsel %vm653, %v679, %v680
      %v682 = vrot.slane %v236, 2
      %v683 = vsel %vm653, %v680, %v682
      %v684 = vrot.slane %v237, 2
      %v685 = vrot.slane %v238, 2
      %v686 = vsel %vm653, %v684, %v685
      %v687 = vrot.slane %v239, 2
      %v688 = vsel %vm653, %v685, %v687
      %v689 = vrot.slane %v240, 2
      %v690 = vrot.slane %v241, 2
      %v691 = vsel %vm653, %v689, %v690
      %v692 = vrot.slane %v242, 2
      %v693 = vsel %vm653, %v690, %v692
      %s710 = scalar_lea.vmem %s1, 256
      %v711 = vld [vmem:[%s710] sm:$0xff]
      %v712 = vld [vmem:[%s710 + $0x8] sm:$0xff]
      %v713 = vld [vmem:[%s710 + $0x10] sm:$0xff]
      %v714 = vld [vmem:[%s710 + $0x18] sm:$0xff]
      %v715 = vld [vmem:[%s710 + $0x20] sm:$0xff]
      %v716 = vld [vmem:[%s710 + $0x28] sm:$0xff]
      %v717 = vld [vmem:[%s710 + $0x30] sm:$0xff]
      %v718 = vld [vmem:[%s710 + $0x38] sm:$0xff]
      %v719 = vld [vmem:[%s710 + $0x40] sm:$0xff]
      %v720 = vld [vmem:[%s710 + $0x48] sm:$0xff]
      %v721 = vld [vmem:[%s710 + $0x50] sm:$0xff]
      %v722 = vld [vmem:[%s710 + $0x58] sm:$0xff]
      %v723 = vld [vmem:[%s710 + $0x60] sm:$0xff]
      %v724 = vld [vmem:[%s710 + $0x68] sm:$0xff]
      %v725 = vld [vmem:[%s710 + $0x70] sm:$0xff]
      %v726 = vld [vmem:[%s710 + $0x78] sm:$0xff]
      %727 = vmatprep.subr.mxu0 0.0
      %728 = vmatpush1.msra.mxu0 %v726
      %729 = vmatprep.subr.mxu0 0.0
      %730 = vmatpush1.msra.mxu0 %v725
      %731 = vmatprep.subr.mxu0 0.0
      %732 = vmatpush1.msra.mxu0 %v724
      %733 = vmatprep.subr.mxu0 0.0
      %734 = vmatpush1.msra.mxu0 %v723
      %735 = vmatprep.subr.mxu0 0.0
      %736 = vmatpush1.msra.mxu0 %v722
      %737 = vmatprep.subr.mxu0 0.0
      %738 = vmatpush1.msra.mxu0 %v721
      %739 = vmatprep.subr.mxu0 0.0
      %740 = vmatpush1.msra.mxu0 %v720
      %741 = vmatprep.subr.mxu0 0.0
      %742 = vmatpush1.msra.mxu0 %v719
      %743 = vmatprep.subr.mxu0 0.0
      %744 = vmatpush1.msra.mxu0 %v718
      %745 = vmatprep.subr.mxu0 0.0
      %746 = vmatpush1.msra.mxu0 %v717
      %747 = vmatprep.subr.mxu0 0.0
      %748 = vmatpush1.msra.mxu0 %v716
      %749 = vmatprep.subr.mxu0 0.0
      %750 = vmatpush1.msra.mxu0 %v715
      %751 = vmatprep.subr.mxu0 0.0
      %752 = vmatpush1.msra.mxu0 %v714
      %753 = vmatprep.subr.mxu0 0.0
      %754 = vmatpush1.msra.mxu0 %v713
      %755 = vmatprep.subr.mxu0 0.0
      %756 = vmatpush1.msra.mxu0 %v712
      %757 = vmatprep.subr.mxu0 0.0
      %758 = vmatpush1.msra.mxu0 %v711
      %759 = vmatprep.subr.mxu0 0.0
      %760 = vmatpush2.msra.mxu0 0.0
      %761 = vmatprep.subr.mxu0 0.0
      %762 = vmatpush2.msra.mxu0 0.0
      %763 = vmatprep.subr.mxu0 0.0
      %764 = vmatpush2.msra.mxu0 0.0
      %765 = vmatprep.subr.mxu0 0.0
      %766 = vmatpush2.msra.mxu0 0.0
      %767 = vmatprep.subr.mxu0 0.0
      %768 = vmatpush2.msra.mxu0 0.0
      %769 = vmatprep.subr.mxu0 0.0
      %770 = vmatpush2.msra.mxu0 0.0
      %771 = vmatprep.subr.mxu0 0.0
      %772 = vmatpush2.msra.mxu0 0.0
      %773 = vmatprep.subr.mxu0 0.0
      %774 = vmatpush2.msra.mxu0 0.0
      %775 = vmatprep.subr.mxu0 0.0
      %776 = vmatpush2.msra.mxu0 0.0
      %777 = vmatprep.subr.mxu0 0.0
      %778 = vmatpush2.msra.mxu0 0.0
      %779 = vmatprep.subr.mxu0 0.0
      %780 = vmatpush2.msra.mxu0 0.0
      %781 = vmatprep.subr.mxu0 0.0
      %782 = vmatpush2.msra.mxu0 0.0
      %783 = vmatprep.subr.mxu0 0.0
      %784 = vmatpush2.msra.mxu0 0.0
      %785 = vmatprep.subr.mxu0 0.0
      %786 = vmatpush2.msra.mxu0 0.0
      %787 = vmatprep.subr.mxu0 0.0
      %788 = vmatpush2.msra.mxu0 0.0
      %789 = vmatprep.subr.mxu0 0.0
      %790 = vmatpush2.msra.mxu0 0.0
      %791 = vmatprep.mubr.f32.mxu0 0.0
      %792 = vmatmul.mubr.f32.gmra.mxu0 %v656
      %v793 = vpop.f32.mrf.mxu0
      %v794 = vadd.f32 0.0, %v793
      %v795 = vpop.f32.mrf.mxu0
      %796 = vmatprep.mubr.f32.mxu0 0.0
      %797 = vmatmul.mubr.f32.gmra.mxu0 %v658
      %v798 = vpop.f32.mrf.mxu0
      %v799 = vadd.f32 0.0, %v798
      %v800 = vpop.f32.mrf.mxu0
      %801 = vmatprep.mubr.f32.mxu0 0.0
      %802 = vmatmul.mubr.f32.gmra.mxu0 %v661
      %v803 = vpop.f32.mrf.mxu0
      %v804 = vadd.f32 0.0, %v803
      %v805 = vpop.f32.mrf.mxu0
      %806 = vmatprep.mubr.f32.mxu0 0.0
      %807 = vmatmul.mubr.f32.gmra.mxu0 %v663
      %v808 = vpop.f32.mrf.mxu0
      %v809 = vadd.f32 0.0, %v808
      %v810 = vpop.f32.mrf.mxu0
      %811 = vmatprep.mubr.f32.mxu0 0.0
      %812 = vmatmul.mubr.f32.gmra.mxu0 %v666
      %v813 = vpop.f32.mrf.mxu0
      %v814 = vadd.f32 0.0, %v813
      %v815 = vpop.f32.mrf.mxu0
      %816 = vmatprep.mubr.f32.mxu0 0.0
      %817 = vmatmul.mubr.f32.gmra.mxu0 %v668
      %v818 = vpop.f32.mrf.mxu0
      %v819 = vadd.f32 0.0, %v818
      %v820 = vpop.f32.mrf.mxu0
      %821 = vmatprep.mubr.f32.mxu0 0.0
      %822 = vmatmul.mubr.f32.gmra.mxu0 %v671
      %v823 = vpop.f32.mrf.mxu0
      %v824 = vadd.f32 0.0, %v823
      %v825 = vpop.f32.mrf.mxu0
      %826 = vmatprep.mubr.f32.mxu0 0.0
      %827 = vmatmul.mubr.f32.gmra.mxu0 %v673
      %v828 = vpop.f32.mrf.mxu0
      %v829 = vadd.f32 0.0, %v828
      %v830 = vpop.f32.mrf.mxu0
      %831 = vmatprep.mubr.f32.mxu0 0.0
      %832 = vmatmul.mubr.f32.gmra.mxu0 %v676
      %v833 = vpop.f32.mrf.mxu0
      %v834 = vadd.f32 0.0, %v833
      %v835 = vpop.f32.mrf.mxu0
      %836 = vmatprep.mubr.f32.mxu0 0.0
      %837 = vmatmul.mubr.f32.gmra.mxu0 %v678
      %v838 = vpop.f32.mrf.mxu0
      %v839 = vadd.f32 0.0, %v838
      %v840 = vpop.f32.mrf.mxu0
      %841 = vmatprep.mubr.f32.mxu0 0.0
      %842 = vmatmul.mubr.f32.gmra.mxu0 %v681
      %v843 = vpop.f32.mrf.mxu0
      %v844 = vadd.f32 0.0, %v843
      %v845 = vpop.f32.mrf.mxu0
      %846 = vmatprep.mubr.f32.mxu0 0.0
      %847 = vmatmul.mubr.f32.gmra.mxu0 %v683
      %v848 = vpop.f32.mrf.mxu0
      %v849 = vadd.f32 0.0, %v848
      %v850 = vpop.f32.mrf.mxu0
      %851 = vmatprep.mubr.f32.mxu0 0.0
      %852 = vmatmul.mubr.f32.gmra.mxu0 %v686
      %v853 = vpop.f32.mrf.mxu0
      %v854 = vadd.f32 0.0, %v853
      %v855 = vpop.f32.mrf.mxu0
      %856 = vmatprep.mubr.f32.mxu0 0.0
      %857 = vmatmul.mubr.f32.gmra.mxu0 %v688
      %v858 = vpop.f32.mrf.mxu0
      %v859 = vadd.f32 0.0, %v858
      %v860 = vpop.f32.mrf.mxu0
      %861 = vmatprep.mubr.f32.mxu0 0.0
      %862 = vmatmul.mubr.f32.gmra.mxu0 %v691
      %v863 = vpop.f32.mrf.mxu0
      %v864 = vadd.f32 0.0, %v863
      %v865 = vpop.f32.mrf.mxu0
      %866 = vmatprep.mubr.f32.mxu0 0.0
      %867 = vmatmul.mubr.f32.gmra.mxu0 %v693
      %v868 = vpop.f32.mrf.mxu0
      %v869 = vadd.f32 0.0, %v868
      %v870 = vpop.f32.mrf.mxu0
      %871 = vdwg.mxu0
      %v872 = vadd.f32 %v575, %v794
      %v873 = vadd.f32 %v580, %v799
      %v874 = vadd.f32 %v585, %v804
      %v875 = vadd.f32 %v590, %v809
      %v876 = vadd.f32 %v595, %v814
      %v877 = vadd.f32 %v600, %v819
      %v878 = vadd.f32 %v605, %v824
      %v879 = vadd.f32 %v610, %v829
      %v880 = vadd.f32 %v615, %v834
      %v881 = vadd.f32 %v620, %v839
      %v882 = vadd.f32 %v625, %v844
      %v883 = vadd.f32 %v630, %v849
      %v884 = vadd.f32 %v635, %v854
      %v885 = vadd.f32 %v640, %v859
      %v886 = vadd.f32 %v645, %v864
      %v887 = vadd.f32 %v650, %v869
      %s888 = scalar_lea.vmem %s1, 384
      %v889 = vld [vmem:[%s888] sm:$0xff]
      %v890 = vld [vmem:[%s888 + $0x8] sm:$0xff]
      %v891 = vld [vmem:[%s888 + $0x10] sm:$0xff]
      %v892 = vld [vmem:[%s888 + $0x18] sm:$0xff]
      %v893 = vld [vmem:[%s888 + $0x20] sm:$0xff]
      %v894 = vld [vmem:[%s888 + $0x28] sm:$0xff]
      %v895 = vld [vmem:[%s888 + $0x30] sm:$0xff]
      %v896 = vld [vmem:[%s888 + $0x38] sm:$0xff]
      %v897 = vld [vmem:[%s888 + $0x40] sm:$0xff]
      %v898 = vld [vmem:[%s888 + $0x48] sm:$0xff]
      %v899 = vld [vmem:[%s888 + $0x50] sm:$0xff]
      %v900 = vld [vmem:[%s888 + $0x58] sm:$0xff]
      %v901 = vld [vmem:[%s888 + $0x60] sm:$0xff]
      %v902 = vld [vmem:[%s888 + $0x68] sm:$0xff]
      %v903 = vld [vmem:[%s888 + $0x70] sm:$0xff]
      %v904 = vld [vmem:[%s888 + $0x78] sm:$0xff]
      %905 = vmatprep.subr.mxu0 0.0
      %906 = vmatpush1.msra.mxu0 %v904
      %907 = vmatprep.subr.mxu0 0.0
      %908 = vmatpush1.msra.mxu0 %v903
      %909 = vmatprep.subr.mxu0 0.0
      %910 = vmatpush1.msra.mxu0 %v902
      %911 = vmatprep.subr.mxu0 0.0
      %912 = vmatpush1.msra.mxu0 %v901
      %913 = vmatprep.subr.mxu0 0.0
      %914 = vmatpush1.msra.mxu0 %v900
      %915 = vmatprep.subr.mxu0 0.0
      %916 = vmatpush1.msra.mxu0 %v899
      %917 = vmatprep.subr.mxu0 0.0
      %918 = vmatpush1.msra.mxu0 %v898
      %919 = vmatprep.subr.mxu0 0.0
      %920 = vmatpush1.msra.mxu0 %v897
      %921 = vmatprep.subr.mxu0 0.0
      %922 = vmatpush1.msra.mxu0 %v896
      %923 = vmatprep.subr.mxu0 0.0
      %924 = vmatpush1.msra.mxu0 %v895
      %925 = vmatprep.subr.mxu0 0.0
      %926 = vmatpush1.msra.mxu0 %v894
      %927 = vmatprep.subr.mxu0 0.0
      %928 = vmatpush1.msra.mxu0 %v893
      %929 = vmatprep.subr.mxu0 0.0
      %930 = vmatpush1.msra.mxu0 %v892
      %931 = vmatprep.subr.mxu0 0.0
      %932 = vmatpush1.msra.mxu0 %v891
      %933 = vmatprep.subr.mxu0 0.0
      %934 = vmatpush1.msra.mxu0 %v890
      %935 = vmatprep.subr.mxu0 0.0
      %936 = vmatpush1.msra.mxu0 %v889
      %937 = vmatprep.subr.mxu0 0.0
      %938 = vmatpush2.msra.mxu0 0.0
      %939 = vmatprep.subr.mxu0 0.0
      %940 = vmatpush2.msra.mxu0 0.0
      %941 = vmatprep.subr.mxu0 0.0
      %942 = vmatpush2.msra.mxu0 0.0
      %943 = vmatprep.subr.mxu0 0.0
      %944 = vmatpush2.msra.mxu0 0.0
      %945 = vmatprep.subr.mxu0 0.0
      %946 = vmatpush2.msra.mxu0 0.0
      %947 = vmatprep.subr.mxu0 0.0
      %948 = vmatpush2.msra.mxu0 0.0
      %949 = vmatprep.subr.mxu0 0.0
      %950 = vmatpush2.msra.mxu0 0.0
      %951 = vmatprep.subr.mxu0 0.0
      %952 = vmatpush2.msra.mxu0 0.0
      %953 = vmatprep.subr.mxu0 0.0
      %954 = vmatpush2.msra.mxu0 0.0
      %955 = vmatprep.subr.mxu0 0.0
      %956 = vmatpush2.msra.mxu0 0.0
      %957 = vmatprep.subr.mxu0 0.0
      %958 = vmatpush2.msra.mxu0 0.0
      %959 = vmatprep.subr.mxu0 0.0
      %960 = vmatpush2.msra.mxu0 0.0
      %961 = vmatprep.subr.mxu0 0.0
      %962 = vmatpush2.msra.mxu0 0.0
      %963 = vmatprep.subr.mxu0 0.0
      %964 = vmatpush2.msra.mxu0 0.0
      %965 = vmatprep.subr.mxu0 0.0
      %966 = vmatpush2.msra.mxu0 0.0
      %967 = vmatprep.subr.mxu0 0.0
      %968 = vmatpush2.msra.mxu0 0.0
      %969 = vmatprep.mubr.f32.mxu0 0.0
      %970 = vmatmul.mubr.f32.gmra.mxu0 %v222
      %v971 = vpop.f32.mrf.mxu0
      %v972 = vadd.f32 0.0, %v971
      %v973 = vpop.f32.mrf.mxu0
      %974 = vmatprep.mubr.f32.mxu0 0.0
      %975 = vmatmul.mubr.f32.gmra.mxu0 %v223
      %v976 = vpop.f32.mrf.mxu0
      %v977 = vadd.f32 0.0, %v976
      %v978 = vpop.f32.mrf.mxu0
      %979 = vmatprep.mubr.f32.mxu0 0.0
      %980 = vmatmul.mubr.f32.gmra.mxu0 %v225
      %v981 = vpop.f32.mrf.mxu0
      %v982 = vadd.f32 0.0, %v981
      %v983 = vpop.f32.mrf.mxu0
      %984 = vmatprep.mubr.f32.mxu0 0.0
      %985 = vmatmul.mubr.f32.gmra.mxu0 %v226
      %v986 = vpop.f32.mrf.mxu0
      %v987 = vadd.f32 0.0, %v986
      %v988 = vpop.f32.mrf.mxu0
      %989 = vmatprep.mubr.f32.mxu0 0.0
      %990 = vmatmul.mubr.f32.gmra.mxu0 %v228
      %v991 = vpop.f32.mrf.mxu0
      %v992 = vadd.f32 0.0, %v991
      %v993 = vpop.f32.mrf.mxu0
      %994 = vmatprep.mubr.f32.mxu0 0.0
      %995 = vmatmul.mubr.f32.gmra.mxu0 %v229
      %v996 = vpop.f32.mrf.mxu0
      %v997 = vadd.f32 0.0, %v996
      %v998 = vpop.f32.mrf.mxu0
      %999 = vmatprep.mubr.f32.mxu0 0.0
      %1000 = vmatmul.mubr.f32.gmra.mxu0 %v231
      %v1001 = vpop.f32.mrf.mxu0
      %v1002 = vadd.f32 0.0, %v1001
      %v1003 = vpop.f32.mrf.mxu0
      %1004 = vmatprep.mubr.f32.mxu0 0.0
      %1005 = vmatmul.mubr.f32.gmra.mxu0 %v232
      %v1006 = vpop.f32.mrf.mxu0
      %v1007 = vadd.f32 0.0, %v1006
      %v1008 = vpop.f32.mrf.mxu0
      %1009 = vmatprep.mubr.f32.mxu0 0.0
      %1010 = vmatmul.mubr.f32.gmra.mxu0 %v234
      %v1011 = vpop.f32.mrf.mxu0
      %v1012 = vadd.f32 0.0, %v1011
      %v1013 = vpop.f32.mrf.mxu0
      %1014 = vmatprep.mubr.f32.mxu0 0.0
      %1015 = vmatmul.mubr.f32.gmra.mxu0 %v235
      %v1016 = vpop.f32.mrf.mxu0
      %v1017 = vadd.f32 0.0, %v1016
      %v1018 = vpop.f32.mrf.mxu0
      %1019 = vmatprep.mubr.f32.mxu0 0.0
      %1020 = vmatmul.mubr.f32.gmra.mxu0 %v237
      %v1021 = vpop.f32.mrf.mxu0
      %v1022 = vadd.f32 0.0, %v1021
      %v1023 = vpop.f32.mrf.mxu0
      %1024 = vmatprep.mubr.f32.mxu0 0.0
      %1025 = vmatmul.mubr.f32.gmra.mxu0 %v238
      %v1026 = vpop.f32.mrf.mxu0
      %v1027 = vadd.f32 0.0, %v1026
      %v1028 = vpop.f32.mrf.mxu0
      %1029 = vmatprep.mubr.f32.mxu0 0.0
      %1030 = vmatmul.mubr.f32.gmra.mxu0 %v240
      %v1031 = vpop.f32.mrf.mxu0
      %v1032 = vadd.f32 0.0, %v1031
      %v1033 = vpop.f32.mrf.mxu0
      %1034 = vmatprep.mubr.f32.mxu0 0.0
      %1035 = vmatmul.mubr.f32.gmra.mxu0 %v241
      %v1036 = vpop.f32.mrf.mxu0
      %v1037 = vadd.f32 0.0, %v1036
      %v1038 = vpop.f32.mrf.mxu0
      %1039 = vmatprep.mubr.f32.mxu0 0.0
      %1040 = vmatmul.mubr.f32.gmra.mxu0 %v243
      %v1041 = vpop.f32.mrf.mxu0
      %v1042 = vadd.f32 0.0, %v1041
      %v1043 = vpop.f32.mrf.mxu0
      %1044 = vmatprep.mubr.f32.mxu0 0.0
      %1045 = vmatmul.mubr.f32.gmra.mxu0 %v244
      %v1046 = vpop.f32.mrf.mxu0
      %v1047 = vadd.f32 0.0, %v1046
      %v1048 = vpop.f32.mrf.mxu0
      %1049 = vdwg.mxu0
      %v1050 = vadd.f32 %v872, %v972
      %v1051 = vadd.f32 %v873, %v977
      %v1052 = vadd.f32 %v874, %v982
      %v1053 = vadd.f32 %v875, %v987
      %v1054 = vadd.f32 %v876, %v992
      %v1055 = vadd.f32 %v877, %v997
      %v1056 = vadd.f32 %v878, %v1002
      %v1057 = vadd.f32 %v879, %v1007
      %v1058 = vadd.f32 %v880, %v1012
      %v1059 = vadd.f32 %v881, %v1017
      %v1060 = vadd.f32 %v882, %v1022
      %v1061 = vadd.f32 %v883, %v1027
      %v1062 = vadd.f32 %v884, %v1032
      %v1063 = vadd.f32 %v885, %v1037
      %v1064 = vadd.f32 %v886, %v1042
      %v1065 = vadd.f32 %v887, %v1047
      %v1069 = vrot.slane %v243, 1
      %v1070 = vrot.slane %v244, 1
      %v1071 = vsel %vm289, %v1069, %v1070
      %v1072 = vrot.slane %v245, 1
      %v1073 = vsel %vm289, %v1070, %v1072
      %s1076 = scalar_lea.vmem %s1, 512
      %v1077 = vld [vmem:[%s1076] sm:$0xff]
      %v1078 = vld [vmem:[%s1076 + $0x8] sm:$0xff]
      %v1079 = vld [vmem:[%s1076 + $0x10] sm:$0xff]
      %v1080 = vld [vmem:[%s1076 + $0x18] sm:$0xff]
      %v1081 = vld [vmem:[%s1076 + $0x20] sm:$0xff]
      %v1082 = vld [vmem:[%s1076 + $0x28] sm:$0xff]
      %v1083 = vld [vmem:[%s1076 + $0x30] sm:$0xff]
      %v1084 = vld [vmem:[%s1076 + $0x38] sm:$0xff]
      %v1085 = vld [vmem:[%s1076 + $0x40] sm:$0xff]
      %v1086 = vld [vmem:[%s1076 + $0x48] sm:$0xff]
      %v1087 = vld [vmem:[%s1076 + $0x50] sm:$0xff]
      %v1088 = vld [vmem:[%s1076 + $0x58] sm:$0xff]
      %v1089 = vld [vmem:[%s1076 + $0x60] sm:$0xff]
      %v1090 = vld [vmem:[%s1076 + $0x68] sm:$0xff]
      %v1091 = vld [vmem:[%s1076 + $0x70] sm:$0xff]
      %v1092 = vld [vmem:[%s1076 + $0x78] sm:$0xff]
      %1093 = vmatprep.subr.mxu0 0.0
      %1094 = vmatpush1.msra.mxu0 %v1092
      %1095 = vmatprep.subr.mxu0 0.0
      %1096 = vmatpush1.msra.mxu0 %v1091
      %1097 = vmatprep.subr.mxu0 0.0
      %1098 = vmatpush1.msra.mxu0 %v1090
      %1099 = vmatprep.subr.mxu0 0.0
      %1100 = vmatpush1.msra.mxu0 %v1089
      %1101 = vmatprep.subr.mxu0 0.0
      %1102 = vmatpush1.msra.mxu0 %v1088
      %1103 = vmatprep.subr.mxu0 0.0
      %1104 = vmatpush1.msra.mxu0 %v1087
      %1105 = vmatprep.subr.mxu0 0.0
      %1106 = vmatpush1.msra.mxu0 %v1086
      %1107 = vmatprep.subr.mxu0 0.0
      %1108 = vmatpush1.msra.mxu0 %v1085
      %1109 = vmatprep.subr.mxu0 0.0
      %1110 = vmatpush1.msra.mxu0 %v1084
      %1111 = vmatprep.subr.mxu0 0.0
      %1112 = vmatpush1.msra.mxu0 %v1083
      %1113 = vmatprep.subr.mxu0 0.0
      %1114 = vmatpush1.msra.mxu0 %v1082
      %1115 = vmatprep.subr.mxu0 0.0
      %1116 = vmatpush1.msra.mxu0 %v1081
      %1117 = vmatprep.subr.mxu0 0.0
      %1118 = vmatpush1.msra.mxu0 %v1080
      %1119 = vmatprep.subr.mxu0 0.0
      %1120 = vmatpush1.msra.mxu0 %v1079
      %1121 = vmatprep.subr.mxu0 0.0
      %1122 = vmatpush1.msra.mxu0 %v1078
      %1123 = vmatprep.subr.mxu0 0.0
      %1124 = vmatpush1.msra.mxu0 %v1077
      %1125 = vmatprep.subr.mxu0 0.0
      %1126 = vmatpush2.msra.mxu0 0.0
      %1127 = vmatprep.subr.mxu0 0.0
      %1128 = vmatpush2.msra.mxu0 0.0
      %1129 = vmatprep.subr.mxu0 0.0
      %1130 = vmatpush2.msra.mxu0 0.0
      %1131 = vmatprep.subr.mxu0 0.0
      %1132 = vmatpush2.msra.mxu0 0.0
      %1133 = vmatprep.subr.mxu0 0.0
      %1134 = vmatpush2.msra.mxu0 0.0
      %1135 = vmatprep.subr.mxu0 0.0
      %1136 = vmatpush2.msra.mxu0 0.0
      %1137 = vmatprep.subr.mxu0 0.0
      %1138 = vmatpush2.msra.mxu0 0.0
      %1139 = vmatprep.subr.mxu0 0.0
      %1140 = vmatpush2.msra.mxu0 0.0
      %1141 = vmatprep.subr.mxu0 0.0
      %1142 = vmatpush2.msra.mxu0 0.0
      %1143 = vmatprep.subr.mxu0 0.0
      %1144 = vmatpush2.msra.mxu0 0.0
      %1145 = vmatprep.subr.mxu0 0.0
      %1146 = vmatpush2.msra.mxu0 0.0
      %1147 = vmatprep.subr.mxu0 0.0
      %1148 = vmatpush2.msra.mxu0 0.0
      %1149 = vmatprep.subr.mxu0 0.0
      %1150 = vmatpush2.msra.mxu0 0.0
      %1151 = vmatprep.subr.mxu0 0.0
      %1152 = vmatpush2.msra.mxu0 0.0
      %1153 = vmatprep.subr.mxu0 0.0
      %1154 = vmatpush2.msra.mxu0 0.0
      %1155 = vmatprep.subr.mxu0 0.0
      %1156 = vmatpush2.msra.mxu0 0.0
      %1157 = vmatprep.mubr.f32.mxu0 0.0
      %1158 = vmatmul.mubr.f32.gmra.mxu0 %v297
      %v1159 = vpop.f32.mrf.mxu0
      %v1160 = vadd.f32 0.0, %v1159
      %v1161 = vpop.f32.mrf.mxu0
      %1162 = vmatprep.mubr.f32.mxu0 0.0
      %1163 = vmatmul.mubr.f32.gmra.mxu0 %v299
      %v1164 = vpop.f32.mrf.mxu0
      %v1165 = vadd.f32 0.0, %v1164
      %v1166 = vpop.f32.mrf.mxu0
      %1167 = vmatprep.mubr.f32.mxu0 0.0
      %1168 = vmatmul.mubr.f32.gmra.mxu0 %v302
      %v1169 = vpop.f32.mrf.mxu0
      %v1170 = vadd.f32 0.0, %v1169
      %v1171 = vpop.f32.mrf.mxu0
      %1172 = vmatprep.mubr.f32.mxu0 0.0
      %1173 = vmatmul.mubr.f32.gmra.mxu0 %v304
      %v1174 = vpop.f32.mrf.mxu0
      %v1175 = vadd.f32 0.0, %v1174
      %v1176 = vpop.f32.mrf.mxu0
      %1177 = vmatprep.mubr.f32.mxu0 0.0
      %1178 = vmatmul.mubr.f32.gmra.mxu0 %v307
      %v1179 = vpop.f32.mrf.mxu0
      %v1180 = vadd.f32 0.0, %v1179
      %v1181 = vpop.f32.mrf.mxu0
      %1182 = vmatprep.mubr.f32.mxu0 0.0
      %1183 = vmatmul.mubr.f32.gmra.mxu0 %v309
      %v1184 = vpop.f32.mrf.mxu0
      %v1185 = vadd.f32 0.0, %v1184
      %v1186 = vpop.f32.mrf.mxu0
      %1187 = vmatprep.mubr.f32.mxu0 0.0
      %1188 = vmatmul.mubr.f32.gmra.mxu0 %v312
      %v1189 = vpop.f32.mrf.mxu0
      %v1190 = vadd.f32 0.0, %v1189
      %v1191 = vpop.f32.mrf.mxu0
      %1192 = vmatprep.mubr.f32.mxu0 0.0
      %1193 = vmatmul.mubr.f32.gmra.mxu0 %v314
      %v1194 = vpop.f32.mrf.mxu0
      %v1195 = vadd.f32 0.0, %v1194
      %v1196 = vpop.f32.mrf.mxu0
      %1197 = vmatprep.mubr.f32.mxu0 0.0
      %1198 = vmatmul.mubr.f32.gmra.mxu0 %v317
      %v1199 = vpop.f32.mrf.mxu0
      %v1200 = vadd.f32 0.0, %v1199
      %v1201 = vpop.f32.mrf.mxu0
      %1202 = vmatprep.mubr.f32.mxu0 0.0
      %1203 = vmatmul.mubr.f32.gmra.mxu0 %v319
      %v1204 = vpop.f32.mrf.mxu0
      %v1205 = vadd.f32 0.0, %v1204
      %v1206 = vpop.f32.mrf.mxu0
      %1207 = vmatprep.mubr.f32.mxu0 0.0
      %1208 = vmatmul.mubr.f32.gmra.mxu0 %v322
      %v1209 = vpop.f32.mrf.mxu0
      %v1210 = vadd.f32 0.0, %v1209
      %v1211 = vpop.f32.mrf.mxu0
      %1212 = vmatprep.mubr.f32.mxu0 0.0
      %1213 = vmatmul.mubr.f32.gmra.mxu0 %v324
      %v1214 = vpop.f32.mrf.mxu0
      %v1215 = vadd.f32 0.0, %v1214
      %v1216 = vpop.f32.mrf.mxu0
      %1217 = vmatprep.mubr.f32.mxu0 0.0
      %1218 = vmatmul.mubr.f32.gmra.mxu0 %v327
      %v1219 = vpop.f32.mrf.mxu0
      %v1220 = vadd.f32 0.0, %v1219
      %v1221 = vpop.f32.mrf.mxu0
      %1222 = vmatprep.mubr.f32.mxu0 0.0
      %1223 = vmatmul.mubr.f32.gmra.mxu0 %v329
      %v1224 = vpop.f32.mrf.mxu0
      %v1225 = vadd.f32 0.0, %v1224
      %v1226 = vpop.f32.mrf.mxu0
      %1227 = vmatprep.mubr.f32.mxu0 0.0
      %1228 = vmatmul.mubr.f32.gmra.mxu0 %v1071
      %v1229 = vpop.f32.mrf.mxu0
      %v1230 = vadd.f32 0.0, %v1229
      %v1231 = vpop.f32.mrf.mxu0
      %1232 = vmatprep.mubr.f32.mxu0 0.0
      %1233 = vmatmul.mubr.f32.gmra.mxu0 %v1073
      %v1234 = vpop.f32.mrf.mxu0
      %v1235 = vadd.f32 0.0, %v1234
      %v1236 = vpop.f32.mrf.mxu0
      %1237 = vdwg.mxu0
      %v1238 = vadd.f32 %v1050, %v1160
      %v1239 = vadd.f32 %v1051, %v1165
      %v1240 = vadd.f32 %v1052, %v1170
      %v1241 = vadd.f32 %v1053, %v1175
      %v1242 = vadd.f32 %v1054, %v1180
      %v1243 = vadd.f32 %v1055, %v1185
      %v1244 = vadd.f32 %v1056, %v1190
      %v1245 = vadd.f32 %v1057, %v1195
      %v1246 = vadd.f32 %v1058, %v1200
      %v1247 = vadd.f32 %v1059, %v1205
      %v1248 = vadd.f32 %v1060, %v1210
      %v1249 = vadd.f32 %v1061, %v1215
      %v1250 = vadd.f32 %v1062, %v1220
      %v1251 = vadd.f32 %v1063, %v1225
      %v1252 = vadd.f32 %v1064, %v1230
      %v1253 = vadd.f32 %v1065, %v1235
      %v1254 = vrot.slane %v243, 2
      %v1255 = vrot.slane %v244, 2
      %v1256 = vsel %vm653, %v1254, %v1255
      %v1257 = vrot.slane %v245, 2
      %v1258 = vsel %vm653, %v1255, %v1257
      %s1261 = scalar_lea.vmem %s1, 640
      %v1262 = vld [vmem:[%s1261] sm:$0xff]
      %v1263 = vld [vmem:[%s1261 + $0x8] sm:$0xff]
      %v1264 = vld [vmem:[%s1261 + $0x10] sm:$0xff]
      %v1265 = vld [vmem:[%s1261 + $0x18] sm:$0xff]
      %v1266 = vld [vmem:[%s1261 + $0x20] sm:$0xff]
      %v1267 = vld [vmem:[%s1261 + $0x28] sm:$0xff]
      %v1268 = vld [vmem:[%s1261 + $0x30] sm:$0xff]
      %v1269 = vld [vmem:[%s1261 + $0x38] sm:$0xff]
      %v1270 = vld [vmem:[%s1261 + $0x40] sm:$0xff]
      %v1271 = vld [vmem:[%s1261 + $0x48] sm:$0xff]
      %v1272 = vld [vmem:[%s1261 + $0x50] sm:$0xff]
      %v1273 = vld [vmem:[%s1261 + $0x58] sm:$0xff]
      %v1274 = vld [vmem:[%s1261 + $0x60] sm:$0xff]
      %v1275 = vld [vmem:[%s1261 + $0x68] sm:$0xff]
      %v1276 = vld [vmem:[%s1261 + $0x70] sm:$0xff]
      %v1277 = vld [vmem:[%s1261 + $0x78] sm:$0xff]
      %1278 = vmatprep.subr.mxu0 0.0
      %1279 = vmatpush1.msra.mxu0 %v1277
      %1280 = vmatprep.subr.mxu0 0.0
      %1281 = vmatpush1.msra.mxu0 %v1276
      %1282 = vmatprep.subr.mxu0 0.0
      %1283 = vmatpush1.msra.mxu0 %v1275
      %1284 = vmatprep.subr.mxu0 0.0
      %1285 = vmatpush1.msra.mxu0 %v1274
      %1286 = vmatprep.subr.mxu0 0.0
      %1287 = vmatpush1.msra.mxu0 %v1273
      %1288 = vmatprep.subr.mxu0 0.0
      %1289 = vmatpush1.msra.mxu0 %v1272
      %1290 = vmatprep.subr.mxu0 0.0
      %1291 = vmatpush1.msra.mxu0 %v1271
      %1292 = vmatprep.subr.mxu0 0.0
      %1293 = vmatpush1.msra.mxu0 %v1270
      %1294 = vmatprep.subr.mxu0 0.0
      %1295 = vmatpush1.msra.mxu0 %v1269
      %1296 = vmatprep.subr.mxu0 0.0
      %1297 = vmatpush1.msra.mxu0 %v1268
      %1298 = vmatprep.subr.mxu0 0.0
      %1299 = vmatpush1.msra.mxu0 %v1267
      %1300 = vmatprep.subr.mxu0 0.0
      %1301 = vmatpush1.msra.mxu0 %v1266
      %1302 = vmatprep.subr.mxu0 0.0
      %1303 = vmatpush1.msra.mxu0 %v1265
      %1304 = vmatprep.subr.mxu0 0.0
      %1305 = vmatpush1.msra.mxu0 %v1264
      %1306 = vmatprep.subr.mxu0 0.0
      %1307 = vmatpush1.msra.mxu0 %v1263
      %1308 = vmatprep.subr.mxu0 0.0
      %1309 = vmatpush1.msra.mxu0 %v1262
      %1310 = vmatprep.subr.mxu0 0.0
      %1311 = vmatpush2.msra.mxu0 0.0
      %1312 = vmatprep.subr.mxu0 0.0
      %1313 = vmatpush2.msra.mxu0 0.0
      %1314 = vmatprep.subr.mxu0 0.0
      %1315 = vmatpush2.msra.mxu0 0.0
      %1316 = vmatprep.subr.mxu0 0.0
      %1317 = vmatpush2.msra.mxu0 0.0
      %1318 = vmatprep.subr.mxu0 0.0
      %1319 = vmatpush2.msra.mxu0 0.0
      %1320 = vmatprep.subr.mxu0 0.0
      %1321 = vmatpush2.msra.mxu0 0.0
      %1322 = vmatprep.subr.mxu0 0.0
      %1323 = vmatpush2.msra.mxu0 0.0
      %1324 = vmatprep.subr.mxu0 0.0
      %1325 = vmatpush2.msra.mxu0 0.0
      %1326 = vmatprep.subr.mxu0 0.0
      %1327 = vmatpush2.msra.mxu0 0.0
      %1328 = vmatprep.subr.mxu0 0.0
      %1329 = vmatpush2.msra.mxu0 0.0
      %1330 = vmatprep.subr.mxu0 0.0
      %1331 = vmatpush2.msra.mxu0 0.0
      %1332 = vmatprep.subr.mxu0 0.0
      %1333 = vmatpush2.msra.mxu0 0.0
      %1334 = vmatprep.subr.mxu0 0.0
      %1335 = vmatpush2.msra.mxu0 0.0
      %1336 = vmatprep.subr.mxu0 0.0
      %1337 = vmatpush2.msra.mxu0 0.0
      %1338 = vmatprep.subr.mxu0 0.0
      %1339 = vmatpush2.msra.mxu0 0.0
      %1340 = vmatprep.subr.mxu0 0.0
      %1341 = vmatpush2.msra.mxu0 0.0
      %1342 = vmatprep.mubr.f32.mxu0 0.0
      %1343 = vmatmul.mubr.f32.gmra.mxu0 %v661
      %v1344 = vpop.f32.mrf.mxu0
      %v1345 = vadd.f32 0.0, %v1344
      %v1346 = vpop.f32.mrf.mxu0
      %1347 = vmatprep.mubr.f32.mxu0 0.0
      %1348 = vmatmul.mubr.f32.gmra.mxu0 %v663
      %v1349 = vpop.f32.mrf.mxu0
      %v1350 = vadd.f32 0.0, %v1349
      %v1351 = vpop.f32.mrf.mxu0
      %1352 = vmatprep.mubr.f32.mxu0 0.0
      %1353 = vmatmul.mubr.f32.gmra.mxu0 %v666
      %v1354 = vpop.f32.mrf.mxu0
      %v1355 = vadd.f32 0.0, %v1354
      %v1356 = vpop.f32.mrf.mxu0
      %1357 = vmatprep.mubr.f32.mxu0 0.0
      %1358 = vmatmul.mubr.f32.gmra.mxu0 %v668
      %v1359 = vpop.f32.mrf.mxu0
      %v1360 = vadd.f32 0.0, %v1359
      %v1361 = vpop.f32.mrf.mxu0
      %1362 = vmatprep.mubr.f32.mxu0 0.0
      %1363 = vmatmul.mubr.f32.gmra.mxu0 %v671
      %v1364 = vpop.f32.mrf.mxu0
      %v1365 = vadd.f32 0.0, %v1364
      %v1366 = vpop.f32.mrf.mxu0
      %1367 = vmatprep.mubr.f32.mxu0 0.0
      %1368 = vmatmul.mubr.f32.gmra.mxu0 %v673
      %v1369 = vpop.f32.mrf.mxu0
      %v1370 = vadd.f32 0.0, %v1369
      %v1371 = vpop.f32.mrf.mxu0
      %1372 = vmatprep.mubr.f32.mxu0 0.0
      %1373 = vmatmul.mubr.f32.gmra.mxu0 %v676
      %v1374 = vpop.f32.mrf.mxu0
      %v1375 = vadd.f32 0.0, %v1374
      %v1376 = vpop.f32.mrf.mxu0
      %1377 = vmatprep.mubr.f32.mxu0 0.0
      %1378 = vmatmul.mubr.f32.gmra.mxu0 %v678
      %v1379 = vpop.f32.mrf.mxu0
      %v1380 = vadd.f32 0.0, %v1379
      %v1381 = vpop.f32.mrf.mxu0
      %1382 = vmatprep.mubr.f32.mxu0 0.0
      %1383 = vmatmul.mubr.f32.gmra.mxu0 %v681
      %v1384 = vpop.f32.mrf.mxu0
      %v1385 = vadd.f32 0.0, %v1384
      %v1386 = vpop.f32.mrf.mxu0
      %1387 = vmatprep.mubr.f32.mxu0 0.0
      %1388 = vmatmul.mubr.f32.gmra.mxu0 %v683
      %v1389 = vpop.f32.mrf.mxu0
      %v1390 = vadd.f32 0.0, %v1389
      %v1391 = vpop.f32.mrf.mxu0
      %1392 = vmatprep.mubr.f32.mxu0 0.0
      %1393 = vmatmul.mubr.f32.gmra.mxu0 %v686
      %v1394 = vpop.f32.mrf.mxu0
      %v1395 = vadd.f32 0.0, %v1394
      %v1396 = vpop.f32.mrf.mxu0
      %1397 = vmatprep.mubr.f32.mxu0 0.0
      %1398 = vmatmul.mubr.f32.gmra.mxu0 %v688
      %v1399 = vpop.f32.mrf.mxu0
      %v1400 = vadd.f32 0.0, %v1399
      %v1401 = vpop.f32.mrf.mxu0
      %1402 = vmatprep.mubr.f32.mxu0 0.0
      %1403 = vmatmul.mubr.f32.gmra.mxu0 %v691
      %v1404 = vpop.f32.mrf.mxu0
      %v1405 = vadd.f32 0.0, %v1404
      %v1406 = vpop.f32.mrf.mxu0
      %1407 = vmatprep.mubr.f32.mxu0 0.0
      %1408 = vmatmul.mubr.f32.gmra.mxu0 %v693
      %v1409 = vpop.f32.mrf.mxu0
      %v1410 = vadd.f32 0.0, %v1409
      %v1411 = vpop.f32.mrf.mxu0
      %1412 = vmatprep.mubr.f32.mxu0 0.0
      %1413 = vmatmul.mubr.f32.gmra.mxu0 %v1256
      %v1414 = vpop.f32.mrf.mxu0
      %v1415 = vadd.f32 0.0, %v1414
      %v1416 = vpop.f32.mrf.mxu0
      %1417 = vmatprep.mubr.f32.mxu0 0.0
      %1418 = vmatmul.mubr.f32.gmra.mxu0 %v1258
      %v1419 = vpop.f32.mrf.mxu0
      %v1420 = vadd.f32 0.0, %v1419
      %v1421 = vpop.f32.mrf.mxu0
      %1422 = vdwg.mxu0
      %v1423 = vadd.f32 %v1238, %v1345
      %v1424 = vadd.f32 %v1239, %v1350
      %v1425 = vadd.f32 %v1240, %v1355
      %v1426 = vadd.f32 %v1241, %v1360
      %v1427 = vadd.f32 %v1242, %v1365
      %v1428 = vadd.f32 %v1243, %v1370
      %v1429 = vadd.f32 %v1244, %v1375
      %v1430 = vadd.f32 %v1245, %v1380
      %v1431 = vadd.f32 %v1246, %v1385
      %v1432 = vadd.f32 %v1247, %v1390
      %v1433 = vadd.f32 %v1248, %v1395
      %v1434 = vadd.f32 %v1249, %v1400
      %v1435 = vadd.f32 %v1250, %v1405
      %v1436 = vadd.f32 %v1251, %v1410
      %v1437 = vadd.f32 %v1252, %v1415
      %v1438 = vadd.f32 %v1253, %v1420
      %s1439 = scalar_lea.vmem %s1, 768
      %v1440 = vld [vmem:[%s1439] sm:$0xff]
      %v1441 = vld [vmem:[%s1439 + $0x8] sm:$0xff]
      %v1442 = vld [vmem:[%s1439 + $0x10] sm:$0xff]
      %v1443 = vld [vmem:[%s1439 + $0x18] sm:$0xff]
      %v1444 = vld [vmem:[%s1439 + $0x20] sm:$0xff]
      %v1445 = vld [vmem:[%s1439 + $0x28] sm:$0xff]
      %v1446 = vld [vmem:[%s1439 + $0x30] sm:$0xff]
      %v1447 = vld [vmem:[%s1439 + $0x38] sm:$0xff]
      %v1448 = vld [vmem:[%s1439 + $0x40] sm:$0xff]
      %v1449 = vld [vmem:[%s1439 + $0x48] sm:$0xff]
      %v1450 = vld [vmem:[%s1439 + $0x50] sm:$0xff]
      %v1451 = vld [vmem:[%s1439 + $0x58] sm:$0xff]
      %v1452 = vld [vmem:[%s1439 + $0x60] sm:$0xff]
      %v1453 = vld [vmem:[%s1439 + $0x68] sm:$0xff]
      %v1454 = vld [vmem:[%s1439 + $0x70] sm:$0xff]
      %v1455 = vld [vmem:[%s1439 + $0x78] sm:$0xff]
      %1456 = vmatprep.subr.mxu0 0.0
      %1457 = vmatpush1.msra.mxu0 %v1455
      %1458 = vmatprep.subr.mxu0 0.0
      %1459 = vmatpush1.msra.mxu0 %v1454
      %1460 = vmatprep.subr.mxu0 0.0
      %1461 = vmatpush1.msra.mxu0 %v1453
      %1462 = vmatprep.subr.mxu0 0.0
      %1463 = vmatpush1.msra.mxu0 %v1452
      %1464 = vmatprep.subr.mxu0 0.0
      %1465 = vmatpush1.msra.mxu0 %v1451
      %1466 = vmatprep.subr.mxu0 0.0
      %1467 = vmatpush1.msra.mxu0 %v1450
      %1468 = vmatprep.subr.mxu0 0.0
      %1469 = vmatpush1.msra.mxu0 %v1449
      %1470 = vmatprep.subr.mxu0 0.0
      %1471 = vmatpush1.msra.mxu0 %v1448
      %1472 = vmatprep.subr.mxu0 0.0
      %1473 = vmatpush1.msra.mxu0 %v1447
      %1474 = vmatprep.subr.mxu0 0.0
      %1475 = vmatpush1.msra.mxu0 %v1446
      %1476 = vmatprep.subr.mxu0 0.0
      %1477 = vmatpush1.msra.mxu0 %v1445
      %1478 = vmatprep.subr.mxu0 0.0
      %1479 = vmatpush1.msra.mxu0 %v1444
      %1480 = vmatprep.subr.mxu0 0.0
      %1481 = vmatpush1.msra.mxu0 %v1443
      %1482 = vmatprep.subr.mxu0 0.0
      %1483 = vmatpush1.msra.mxu0 %v1442
      %1484 = vmatprep.subr.mxu0 0.0
      %1485 = vmatpush1.msra.mxu0 %v1441
      %1486 = vmatprep.subr.mxu0 0.0
      %1487 = vmatpush1.msra.mxu0 %v1440
      %1488 = vmatprep.subr.mxu0 0.0
      %1489 = vmatpush2.msra.mxu0 0.0
      %1490 = vmatprep.subr.mxu0 0.0
      %1491 = vmatpush2.msra.mxu0 0.0
      %1492 = vmatprep.subr.mxu0 0.0
      %1493 = vmatpush2.msra.mxu0 0.0
      %1494 = vmatprep.subr.mxu0 0.0
      %1495 = vmatpush2.msra.mxu0 0.0
      %1496 = vmatprep.subr.mxu0 0.0
      %1497 = vmatpush2.msra.mxu0 0.0
      %1498 = vmatprep.subr.mxu0 0.0
      %1499 = vmatpush2.msra.mxu0 0.0
      %1500 = vmatprep.subr.mxu0 0.0
      %1501 = vmatpush2.msra.mxu0 0.0
      %1502 = vmatprep.subr.mxu0 0.0
      %1503 = vmatpush2.msra.mxu0 0.0
      %1504 = vmatprep.subr.mxu0 0.0
      %1505 = vmatpush2.msra.mxu0 0.0
      %1506 = vmatprep.subr.mxu0 0.0
      %1507 = vmatpush2.msra.mxu0 0.0
      %1508 = vmatprep.subr.mxu0 0.0
      %1509 = vmatpush2.msra.mxu0 0.0
      %1510 = vmatprep.subr.mxu0 0.0
      %1511 = vmatpush2.msra.mxu0 0.0
      %1512 = vmatprep.subr.mxu0 0.0
      %1513 = vmatpush2.msra.mxu0 0.0
      %1514 = vmatprep.subr.mxu0 0.0
      %1515 = vmatpush2.msra.mxu0 0.0
      %1516 = vmatprep.subr.mxu0 0.0
      %1517 = vmatpush2.msra.mxu0 0.0
      %1518 = vmatprep.subr.mxu0 0.0
      %1519 = vmatpush2.msra.mxu0 0.0
      %1520 = vmatprep.mubr.f32.mxu0 0.0
      %1521 = vmatmul.mubr.f32.gmra.mxu0 %v225
      %v1522 = vpop.f32.mrf.mxu0
      %v1523 = vadd.f32 0.0, %v1522
      %v1524 = vpop.f32.mrf.mxu0
      %1525 = vmatprep.mubr.f32.mxu0 0.0
      %1526 = vmatmul.mubr.f32.gmra.mxu0 %v226
      %v1527 = vpop.f32.mrf.mxu0
      %v1528 = vadd.f32 0.0, %v1527
      %v1529 = vpop.f32.mrf.mxu0
      %1530 = vmatprep.mubr.f32.mxu0 0.0
      %1531 = vmatmul.mubr.f32.gmra.mxu0 %v228
      %v1532 = vpop.f32.mrf.mxu0
      %v1533 = vadd.f32 0.0, %v1532
      %v1534 = vpop.f32.mrf.mxu0
      %1535 = vmatprep.mubr.f32.mxu0 0.0
      %1536 = vmatmul.mubr.f32.gmra.mxu0 %v229
      %v1537 = vpop.f32.mrf.mxu0
      %v1538 = vadd.f32 0.0, %v1537
      %v1539 = vpop.f32.mrf.mxu0
      %1540 = vmatprep.mubr.f32.mxu0 0.0
      %1541 = vmatmul.mubr.f32.gmra.mxu0 %v231
      %v1542 = vpop.f32.mrf.mxu0
      %v1543 = vadd.f32 0.0, %v1542
      %v1544 = vpop.f32.mrf.mxu0
      %1545 = vmatprep.mubr.f32.mxu0 0.0
      %1546 = vmatmul.mubr.f32.gmra.mxu0 %v232
      %v1547 = vpop.f32.mrf.mxu0
      %v1548 = vadd.f32 0.0, %v1547
      %v1549 = vpop.f32.mrf.mxu0
      %1550 = vmatprep.mubr.f32.mxu0 0.0
      %1551 = vmatmul.mubr.f32.gmra.mxu0 %v234
      %v1552 = vpop.f32.mrf.mxu0
      %v1553 = vadd.f32 0.0, %v1552
      %v1554 = vpop.f32.mrf.mxu0
      %1555 = vmatprep.mubr.f32.mxu0 0.0
      %1556 = vmatmul.mubr.f32.gmra.mxu0 %v235
      %v1557 = vpop.f32.mrf.mxu0
      %v1558 = vadd.f32 0.0, %v1557
      %v1559 = vpop.f32.mrf.mxu0
      %1560 = vmatprep.mubr.f32.mxu0 0.0
      %1561 = vmatmul.mubr.f32.gmra.mxu0 %v237
      %v1562 = vpop.f32.mrf.mxu0
      %v1563 = vadd.f32 0.0, %v1562
      %v1564 = vpop.f32.mrf.mxu0
      %1565 = vmatprep.mubr.f32.mxu0 0.0
      %1566 = vmatmul.mubr.f32.gmra.mxu0 %v238
      %v1567 = vpop.f32.mrf.mxu0
      %v1568 = vadd.f32 0.0, %v1567
      %v1569 = vpop.f32.mrf.mxu0
      %1570 = vmatprep.mubr.f32.mxu0 0.0
      %1571 = vmatmul.mubr.f32.gmra.mxu0 %v240
      %v1572 = vpop.f32.mrf.mxu0
      %v1573 = vadd.f32 0.0, %v1572
      %v1574 = vpop.f32.mrf.mxu0
      %1575 = vmatprep.mubr.f32.mxu0 0.0
      %1576 = vmatmul.mubr.f32.gmra.mxu0 %v241
      %v1577 = vpop.f32.mrf.mxu0
      %v1578 = vadd.f32 0.0, %v1577
      %v1579 = vpop.f32.mrf.mxu0
      %1580 = vmatprep.mubr.f32.mxu0 0.0
      %1581 = vmatmul.mubr.f32.gmra.mxu0 %v243
      %v1582 = vpop.f32.mrf.mxu0
      %v1583 = vadd.f32 0.0, %v1582
      %v1584 = vpop.f32.mrf.mxu0
      %1585 = vmatprep.mubr.f32.mxu0 0.0
      %1586 = vmatmul.mubr.f32.gmra.mxu0 %v244
      %v1587 = vpop.f32.mrf.mxu0
      %v1588 = vadd.f32 0.0, %v1587
      %v1589 = vpop.f32.mrf.mxu0
      %1590 = vmatprep.mubr.f32.mxu0 0.0
      %1591 = vmatmul.mubr.f32.gmra.mxu0 %v246
      %v1592 = vpop.f32.mrf.mxu0
      %v1593 = vadd.f32 0.0, %v1592
      %v1594 = vpop.f32.mrf.mxu0
      %1595 = vmatprep.mubr.f32.mxu0 0.0
      %1596 = vmatmul.mubr.f32.gmra.mxu0 %v247
      %v1597 = vpop.f32.mrf.mxu0
      %v1598 = vadd.f32 0.0, %v1597
      %v1599 = vpop.f32.mrf.mxu0
      %1600 = vdwg.mxu0
      %v1601 = vadd.f32 %v1423, %v1523
      %v1602 = vadd.f32 %v1424, %v1528
      %v1603 = vadd.f32 %v1425, %v1533
      %v1604 = vadd.f32 %v1426, %v1538
      %v1605 = vadd.f32 %v1427, %v1543
      %v1606 = vadd.f32 %v1428, %v1548
      %v1607 = vadd.f32 %v1429, %v1553
      %v1608 = vadd.f32 %v1430, %v1558
      %v1609 = vadd.f32 %v1431, %v1563
      %v1610 = vadd.f32 %v1432, %v1568
      %v1611 = vadd.f32 %v1433, %v1573
      %v1612 = vadd.f32 %v1434, %v1578
      %v1613 = vadd.f32 %v1435, %v1583
      %v1614 = vadd.f32 %v1436, %v1588
      %v1615 = vadd.f32 %v1437, %v1593
      %v1616 = vadd.f32 %v1438, %v1598
      %v1620 = vrot.slane %v246, 1
      %v1621 = vrot.slane %v247, 1
      %v1622 = vsel %vm289, %v1620, %v1621
      %v1623 = vrot.slane %v248, 1
      %v1624 = vsel %vm289, %v1621, %v1623
      %s1627 = scalar_lea.vmem %s1, 896
      %v1628 = vld [vmem:[%s1627] sm:$0xff]
      %v1629 = vld [vmem:[%s1627 + $0x8] sm:$0xff]
      %v1630 = vld [vmem:[%s1627 + $0x10] sm:$0xff]
      %v1631 = vld [vmem:[%s1627 + $0x18] sm:$0xff]
      %v1632 = vld [vmem:[%s1627 + $0x20] sm:$0xff]
      %v1633 = vld [vmem:[%s1627 + $0x28] sm:$0xff]
      %v1634 = vld [vmem:[%s1627 + $0x30] sm:$0xff]
      %v1635 = vld [vmem:[%s1627 + $0x38] sm:$0xff]
      %v1636 = vld [vmem:[%s1627 + $0x40] sm:$0xff]
      %v1637 = vld [vmem:[%s1627 + $0x48] sm:$0xff]
      %v1638 = vld [vmem:[%s1627 + $0x50] sm:$0xff]
      %v1639 = vld [vmem:[%s1627 + $0x58] sm:$0xff]
      %v1640 = vld [vmem:[%s1627 + $0x60] sm:$0xff]
      %v1641 = vld [vmem:[%s1627 + $0x68] sm:$0xff]
      %v1642 = vld [vmem:[%s1627 + $0x70] sm:$0xff]
      %v1643 = vld [vmem:[%s1627 + $0x78] sm:$0xff]
      %1644 = vmatprep.subr.mxu0 0.0
      %1645 = vmatpush1.msra.mxu0 %v1643
      %1646 = vmatprep.subr.mxu0 0.0
      %1647 = vmatpush1.msra.mxu0 %v1642
      %1648 = vmatprep.subr.mxu0 0.0
      %1649 = vmatpush1.msra.mxu0 %v1641
      %1650 = vmatprep.subr.mxu0 0.0
      %1651 = vmatpush1.msra.mxu0 %v1640
      %1652 = vmatprep.subr.mxu0 0.0
      %1653 = vmatpush1.msra.mxu0 %v1639
      %1654 = vmatprep.subr.mxu0 0.0
      %1655 = vmatpush1.msra.mxu0 %v1638
      %1656 = vmatprep.subr.mxu0 0.0
      %1657 = vmatpush1.msra.mxu0 %v1637
      %1658 = vmatprep.subr.mxu0 0.0
      %1659 = vmatpush1.msra.mxu0 %v1636
      %1660 = vmatprep.subr.mxu0 0.0
      %1661 = vmatpush1.msra.mxu0 %v1635
      %1662 = vmatprep.subr.mxu0 0.0
      %1663 = vmatpush1.msra.mxu0 %v1634
      %1664 = vmatprep.subr.mxu0 0.0
      %1665 = vmatpush1.msra.mxu0 %v1633
      %1666 = vmatprep.subr.mxu0 0.0
      %1667 = vmatpush1.msra.mxu0 %v1632
      %1668 = vmatprep.subr.mxu0 0.0
      %1669 = vmatpush1.msra.mxu0 %v1631
      %1670 = vmatprep.subr.mxu0 0.0
      %1671 = vmatpush1.msra.mxu0 %v1630
      %1672 = vmatprep.subr.mxu0 0.0
      %1673 = vmatpush1.msra.mxu0 %v1629
      %1674 = vmatprep.subr.mxu0 0.0
      %1675 = vmatpush1.msra.mxu0 %v1628
      %1676 = vmatprep.subr.mxu0 0.0
      %1677 = vmatpush2.msra.mxu0 0.0
      %1678 = vmatprep.subr.mxu0 0.0
      %1679 = vmatpush2.msra.mxu0 0.0
      %1680 = vmatprep.subr.mxu0 0.0
      %1681 = vmatpush2.msra.mxu0 0.0
      %1682 = vmatprep.subr.mxu0 0.0
      %1683 = vmatpush2.msra.mxu0 0.0
      %1684 = vmatprep.subr.mxu0 0.0
      %1685 = vmatpush2.msra.mxu0 0.0
      %1686 = vmatprep.subr.mxu0 0.0
      %1687 = vmatpush2.msra.mxu0 0.0
      %1688 = vmatprep.subr.mxu0 0.0
      %1689 = vmatpush2.msra.mxu0 0.0
      %1690 = vmatprep.subr.mxu0 0.0
      %1691 = vmatpush2.msra.mxu0 0.0
      %1692 = vmatprep.subr.mxu0 0.0
      %1693 = vmatpush2.msra.mxu0 0.0
      %1694 = vmatprep.subr.mxu0 0.0
      %1695 = vmatpush2.msra.mxu0 0.0
      %1696 = vmatprep.subr.mxu0 0.0
      %1697 = vmatpush2.msra.mxu0 0.0
      %1698 = vmatprep.subr.mxu0 0.0
      %1699 = vmatpush2.msra.mxu0 0.0
      %1700 = vmatprep.subr.mxu0 0.0
      %1701 = vmatpush2.msra.mxu0 0.0
      %1702 = vmatprep.subr.mxu0 0.0
      %1703 = vmatpush2.msra.mxu0 0.0
      %1704 = vmatprep.subr.mxu0 0.0
      %1705 = vmatpush2.msra.mxu0 0.0
      %1706 = vmatprep.subr.mxu0 0.0
      %1707 = vmatpush2.msra.mxu0 0.0
      %1708 = vmatprep.mubr.f32.mxu0 0.0
      %1709 = vmatmul.mubr.f32.gmra.mxu0 %v302
      %v1710 = vpop.f32.mrf.mxu0
      %v1711 = vadd.f32 0.0, %v1710
      %v1712 = vpop.f32.mrf.mxu0
      %1713 = vmatprep.mubr.f32.mxu0 0.0
      %1714 = vmatmul.mubr.f32.gmra.mxu0 %v304
      %v1715 = vpop.f32.mrf.mxu0
      %v1716 = vadd.f32 0.0, %v1715
      %v1717 = vpop.f32.mrf.mxu0
      %1718 = vmatprep.mubr.f32.mxu0 0.0
      %1719 = vmatmul.mubr.f32.gmra.mxu0 %v307
      %v1720 = vpop.f32.mrf.mxu0
      %v1721 = vadd.f32 0.0, %v1720
      %v1722 = vpop.f32.mrf.mxu0
      %1723 = vmatprep.mubr.f32.mxu0 0.0
      %1724 = vmatmul.mubr.f32.gmra.mxu0 %v309
      %v1725 = vpop.f32.mrf.mxu0
      %v1726 = vadd.f32 0.0, %v1725
      %v1727 = vpop.f32.mrf.mxu0
      %1728 = vmatprep.mubr.f32.mxu0 0.0
      %1729 = vmatmul.mubr.f32.gmra.mxu0 %v312
      %v1730 = vpop.f32.mrf.mxu0
      %v1731 = vadd.f32 0.0, %v1730
      %v1732 = vpop.f32.mrf.mxu0
      %1733 = vmatprep.mubr.f32.mxu0 0.0
      %1734 = vmatmul.mubr.f32.gmra.mxu0 %v314
      %v1735 = vpop.f32.mrf.mxu0
      %v1736 = vadd.f32 0.0, %v1735
      %v1737 = vpop.f32.mrf.mxu0
      %1738 = vmatprep.mubr.f32.mxu0 0.0
      %1739 = vmatmul.mubr.f32.gmra.mxu0 %v317
      %v1740 = vpop.f32.mrf.mxu0
      %v1741 = vadd.f32 0.0, %v1740
      %v1742 = vpop.f32.mrf.mxu0
      %1743 = vmatprep.mubr.f32.mxu0 0.0
      %1744 = vmatmul.mubr.f32.gmra.mxu0 %v319
      %v1745 = vpop.f32.mrf.mxu0
      %v1746 = vadd.f32 0.0, %v1745
      %v1747 = vpop.f32.mrf.mxu0
      %1748 = vmatprep.mubr.f32.mxu0 0.0
      %1749 = vmatmul.mubr.f32.gmra.mxu0 %v322
      %v1750 = vpop.f32.mrf.mxu0
      %v1751 = vadd.f32 0.0, %v1750
      %v1752 = vpop.f32.mrf.mxu0
      %1753 = vmatprep.mubr.f32.mxu0 0.0
      %1754 = vmatmul.mubr.f32.gmra.mxu0 %v324
      %v1755 = vpop.f32.mrf.mxu0
      %v1756 = vadd.f32 0.0, %v1755
      %v1757 = vpop.f32.mrf.mxu0
      %1758 = vmatprep.mubr.f32.mxu0 0.0
      %1759 = vmatmul.mubr.f32.gmra.mxu0 %v327
      %v1760 = vpop.f32.mrf.mxu0
      %v1761 = vadd.f32 0.0, %v1760
      %v1762 = vpop.f32.mrf.mxu0
      %1763 = vmatprep.mubr.f32.mxu0 0.0
      %1764 = vmatmul.mubr.f32.gmra.mxu0 %v329
      %v1765 = vpop.f32.mrf.mxu0
      %v1766 = vadd.f32 0.0, %v1765
      %v1767 = vpop.f32.mrf.mxu0
      %1768 = vmatprep.mubr.f32.mxu0 0.0
      %1769 = vmatmul.mubr.f32.gmra.mxu0 %v1071
      %v1770 = vpop.f32.mrf.mxu0
      %v1771 = vadd.f32 0.0, %v1770
      %v1772 = vpop.f32.mrf.mxu0
      %1773 = vmatprep.mubr.f32.mxu0 0.0
      %1774 = vmatmul.mubr.f32.gmra.mxu0 %v1073
      %v1775 = vpop.f32.mrf.mxu0
      %v1776 = vadd.f32 0.0, %v1775
      %v1777 = vpop.f32.mrf.mxu0
      %1778 = vmatprep.mubr.f32.mxu0 0.0
      %1779 = vmatmul.mubr.f32.gmra.mxu0 %v1622
      %v1780 = vpop.f32.mrf.mxu0
      %v1781 = vadd.f32 0.0, %v1780
      %v1782 = vpop.f32.mrf.mxu0
      %1783 = vmatprep.mubr.f32.mxu0 0.0
      %1784 = vmatmul.mubr.f32.gmra.mxu0 %v1624
      %v1785 = vpop.f32.mrf.mxu0
      %v1786 = vadd.f32 0.0, %v1785
      %v1787 = vpop.f32.mrf.mxu0
      %1788 = vdwg.mxu0
      %v1789 = vadd.f32 %v1601, %v1711
      %v1790 = vadd.f32 %v1602, %v1716
      %v1791 = vadd.f32 %v1603, %v1721
      %v1792 = vadd.f32 %v1604, %v1726
      %v1793 = vadd.f32 %v1605, %v1731
      %v1794 = vadd.f32 %v1606, %v1736
      %v1795 = vadd.f32 %v1607, %v1741
      %v1796 = vadd.f32 %v1608, %v1746
      %v1797 = vadd.f32 %v1609, %v1751
      %v1798 = vadd.f32 %v1610, %v1756
      %v1799 = vadd.f32 %v1611, %v1761
      %v1800 = vadd.f32 %v1612, %v1766
      %v1801 = vadd.f32 %v1613, %v1771
      %v1802 = vadd.f32 %v1614, %v1776
      %v1803 = vadd.f32 %v1615, %v1781
      %v1804 = vadd.f32 %v1616, %v1786
      %v1805 = vrot.slane %v246, 2
      %v1806 = vrot.slane %v247, 2
      %v1807 = vsel %vm653, %v1805, %v1806
      %v1808 = vrot.slane %v248, 2
      %v1809 = vsel %vm653, %v1806, %v1808
      %s1812 = scalar_lea.vmem %s1, 1024
      %v1813 = vld [vmem:[%s1812] sm:$0xff]
      %v1814 = vld [vmem:[%s1812 + $0x8] sm:$0xff]
      %v1815 = vld [vmem:[%s1812 + $0x10] sm:$0xff]
      %v1816 = vld [vmem:[%s1812 + $0x18] sm:$0xff]
      %v1817 = vld [vmem:[%s1812 + $0x20] sm:$0xff]
      %v1818 = vld [vmem:[%s1812 + $0x28] sm:$0xff]
      %v1819 = vld [vmem:[%s1812 + $0x30] sm:$0xff]
      %v1820 = vld [vmem:[%s1812 + $0x38] sm:$0xff]
      %v1821 = vld [vmem:[%s1812 + $0x40] sm:$0xff]
      %v1822 = vld [vmem:[%s1812 + $0x48] sm:$0xff]
      %v1823 = vld [vmem:[%s1812 + $0x50] sm:$0xff]
      %v1824 = vld [vmem:[%s1812 + $0x58] sm:$0xff]
      %v1825 = vld [vmem:[%s1812 + $0x60] sm:$0xff]
      %v1826 = vld [vmem:[%s1812 + $0x68] sm:$0xff]
      %v1827 = vld [vmem:[%s1812 + $0x70] sm:$0xff]
      %v1828 = vld [vmem:[%s1812 + $0x78] sm:$0xff]
      %1829 = vmatprep.subr.mxu0 0.0
      %1830 = vmatpush1.msra.mxu0 %v1828
      %1831 = vmatprep.subr.mxu0 0.0
      %1832 = vmatpush1.msra.mxu0 %v1827
      %1833 = vmatprep.subr.mxu0 0.0
      %1834 = vmatpush1.msra.mxu0 %v1826
      %1835 = vmatprep.subr.mxu0 0.0
      %1836 = vmatpush1.msra.mxu0 %v1825
      %1837 = vmatprep.subr.mxu0 0.0
      %1838 = vmatpush1.msra.mxu0 %v1824
      %1839 = vmatprep.subr.mxu0 0.0
      %1840 = vmatpush1.msra.mxu0 %v1823
      %1841 = vmatprep.subr.mxu0 0.0
      %1842 = vmatpush1.msra.mxu0 %v1822
      %1843 = vmatprep.subr.mxu0 0.0
      %1844 = vmatpush1.msra.mxu0 %v1821
      %1845 = vmatprep.subr.mxu0 0.0
      %1846 = vmatpush1.msra.mxu0 %v1820
      %1847 = vmatprep.subr.mxu0 0.0
      %1848 = vmatpush1.msra.mxu0 %v1819
      %1849 = vmatprep.subr.mxu0 0.0
      %1850 = vmatpush1.msra.mxu0 %v1818
      %1851 = vmatprep.subr.mxu0 0.0
      %1852 = vmatpush1.msra.mxu0 %v1817
      %1853 = vmatprep.subr.mxu0 0.0
      %1854 = vmatpush1.msra.mxu0 %v1816
      %1855 = vmatprep.subr.mxu0 0.0
      %1856 = vmatpush1.msra.mxu0 %v1815
      %1857 = vmatprep.subr.mxu0 0.0
      %1858 = vmatpush1.msra.mxu0 %v1814
      %1859 = vmatprep.subr.mxu0 0.0
      %1860 = vmatpush1.msra.mxu0 %v1813
      %1861 = vmatprep.subr.mxu0 0.0
      %1862 = vmatpush2.msra.mxu0 0.0
      %1863 = vmatprep.subr.mxu0 0.0
      %1864 = vmatpush2.msra.mxu0 0.0
      %1865 = vmatprep.subr.mxu0 0.0
      %1866 = vmatpush2.msra.mxu0 0.0
      %1867 = vmatprep.subr.mxu0 0.0
      %1868 = vmatpush2.msra.mxu0 0.0
      %1869 = vmatprep.subr.mxu0 0.0
      %1870 = vmatpush2.msra.mxu0 0.0
      %1871 = vmatprep.subr.mxu0 0.0
      %1872 = vmatpush2.msra.mxu0 0.0
      %1873 = vmatprep.subr.mxu0 0.0
      %1874 = vmatpush2.msra.mxu0 0.0
      %1875 = vmatprep.subr.mxu0 0.0
      %1876 = vmatpush2.msra.mxu0 0.0
      %1877 = vmatprep.subr.mxu0 0.0
      %1878 = vmatpush2.msra.mxu0 0.0
      %1879 = vmatprep.subr.mxu0 0.0
      %1880 = vmatpush2.msra.mxu0 0.0
      %1881 = vmatprep.subr.mxu0 0.0
      %1882 = vmatpush2.msra.mxu0 0.0
      %1883 = vmatprep.subr.mxu0 0.0
      %1884 = vmatpush2.msra.mxu0 0.0
      %1885 = vmatprep.subr.mxu0 0.0
      %1886 = vmatpush2.msra.mxu0 0.0
      %1887 = vmatprep.subr.mxu0 0.0
      %1888 = vmatpush2.msra.mxu0 0.0
      %1889 = vmatprep.subr.mxu0 0.0
      %1890 = vmatpush2.msra.mxu0 0.0
      %1891 = vmatprep.subr.mxu0 0.0
      %1892 = vmatpush2.msra.mxu0 0.0
      %1893 = vmatprep.mubr.f32.mxu0 0.0
      %1894 = vmatmul.mubr.f32.gmra.mxu0 %v666
      %v1895 = vpop.f32.mrf.mxu0
      %v1896 = vadd.f32 0.0, %v1895
      %v1897 = vpop.f32.mrf.mxu0
      %1898 = vmatprep.mubr.f32.mxu0 0.0
      %1899 = vmatmul.mubr.f32.gmra.mxu0 %v668
      %v1900 = vpop.f32.mrf.mxu0
      %v1901 = vadd.f32 0.0, %v1900
      %v1902 = vpop.f32.mrf.mxu0
      %1903 = vmatprep.mubr.f32.mxu0 0.0
      %1904 = vmatmul.mubr.f32.gmra.mxu0 %v671
      %v1905 = vpop.f32.mrf.mxu0
      %v1906 = vadd.f32 0.0, %v1905
      %v1907 = vpop.f32.mrf.mxu0
      %1908 = vmatprep.mubr.f32.mxu0 0.0
      %1909 = vmatmul.mubr.f32.gmra.mxu0 %v673
      %v1910 = vpop.f32.mrf.mxu0
      %v1911 = vadd.f32 0.0, %v1910
      %v1912 = vpop.f32.mrf.mxu0
      %1913 = vmatprep.mubr.f32.mxu0 0.0
      %1914 = vmatmul.mubr.f32.gmra.mxu0 %v676
      %v1915 = vpop.f32.mrf.mxu0
      %v1916 = vadd.f32 0.0, %v1915
      %v1917 = vpop.f32.mrf.mxu0
      %1918 = vmatprep.mubr.f32.mxu0 0.0
      %1919 = vmatmul.mubr.f32.gmra.mxu0 %v678
      %v1920 = vpop.f32.mrf.mxu0
      %v1921 = vadd.f32 0.0, %v1920
      %v1922 = vpop.f32.mrf.mxu0
      %1923 = vmatprep.mubr.f32.mxu0 0.0
      %1924 = vmatmul.mubr.f32.gmra.mxu0 %v681
      %v1925 = vpop.f32.mrf.mxu0
      %v1926 = vadd.f32 0.0, %v1925
      %v1927 = vpop.f32.mrf.mxu0
      %1928 = vmatprep.mubr.f32.mxu0 0.0
      %1929 = vmatmul.mubr.f32.gmra.mxu0 %v683
      %v1930 = vpop.f32.mrf.mxu0
      %v1931 = vadd.f32 0.0, %v1930
      %v1932 = vpop.f32.mrf.mxu0
      %1933 = vmatprep.mubr.f32.mxu0 0.0
      %1934 = vmatmul.mubr.f32.gmra.mxu0 %v686
      %v1935 = vpop.f32.mrf.mxu0
      %v1936 = vadd.f32 0.0, %v1935
      %v1937 = vpop.f32.mrf.mxu0
      %1938 = vmatprep.mubr.f32.mxu0 0.0
      %1939 = vmatmul.mubr.f32.gmra.mxu0 %v688
      %v1940 = vpop.f32.mrf.mxu0
      %v1941 = vadd.f32 0.0, %v1940
      %v1942 = vpop.f32.mrf.mxu0
      %1943 = vmatprep.mubr.f32.mxu0 0.0
      %1944 = vmatmul.mubr.f32.gmra.mxu0 %v691
      %v1945 = vpop.f32.mrf.mxu0
      %v1946 = vadd.f32 0.0, %v1945
      %v1947 = vpop.f32.mrf.mxu0
      %1948 = vmatprep.mubr.f32.mxu0 0.0
      %1949 = vmatmul.mubr.f32.gmra.mxu0 %v693
      %v1950 = vpop.f32.mrf.mxu0
      %v1951 = vadd.f32 0.0, %v1950
      %v1952 = vpop.f32.mrf.mxu0
      %1953 = vmatprep.mubr.f32.mxu0 0.0
      %1954 = vmatmul.mubr.f32.gmra.mxu0 %v1256
      %v1955 = vpop.f32.mrf.mxu0
      %v1956 = vadd.f32 0.0, %v1955
      %v1957 = vpop.f32.mrf.mxu0
      %1958 = vmatprep.mubr.f32.mxu0 0.0
      %1959 = vmatmul.mubr.f32.gmra.mxu0 %v1258
      %v1960 = vpop.f32.mrf.mxu0
      %v1961 = vadd.f32 0.0, %v1960
      %v1962 = vpop.f32.mrf.mxu0
      %1963 = vmatprep.mubr.f32.mxu0 0.0
      %1964 = vmatmul.mubr.f32.gmra.mxu0 %v1807
      %v1965 = vpop.f32.mrf.mxu0
      %v1966 = vadd.f32 0.0, %v1965
      %v1967 = vpop.f32.mrf.mxu0
      %1968 = vmatprep.mubr.f32.mxu0 0.0
      %1969 = vmatmul.mubr.f32.gmra.mxu0 %v1809
      %v1970 = vpop.f32.mrf.mxu0
      %v1971 = vadd.f32 0.0, %v1970
      %v1972 = vpop.f32.mrf.mxu0
      %1973 = vdwg.mxu0
      %v1974 = vadd.f32 %v1789, %v1896
      %v1975 = vadd.f32 %v1790, %v1901
      %v1976 = vadd.f32 %v1791, %v1906
      %v1977 = vadd.f32 %v1792, %v1911
      %v1978 = vadd.f32 %v1793, %v1916
      %v1979 = vadd.f32 %v1794, %v1921
      %v1980 = vadd.f32 %v1795, %v1926
      %v1981 = vadd.f32 %v1796, %v1931
      %v1982 = vadd.f32 %v1797, %v1936
      %v1983 = vadd.f32 %v1798, %v1941
      %v1984 = vadd.f32 %v1799, %v1946
      %v1985 = vadd.f32 %v1800, %v1951
      %v1986 = vadd.f32 %v1801, %v1956
      %v1987 = vadd.f32 %v1802, %v1961
      %v1988 = vadd.f32 %v1803, %v1966
      %v1989 = vadd.f32 %v1804, %v1971
      %1990 = vst [vmem:[%s210] sm:$0xff] %v1974
      %1991 = vst [vmem:[%s210 + $0x8] sm:$0xff] %v1975
      %1992 = vst [vmem:[%s210 + $0x10] sm:$0xff] %v1976
      %1993 = vst [vmem:[%s210 + $0x18] sm:$0xff] %v1977
      %1994 = vst [vmem:[%s210 + $0x20] sm:$0xff] %v1978
      %1995 = vst [vmem:[%s210 + $0x28] sm:$0xff] %v1979
      %1996 = vst [vmem:[%s210 + $0x30] sm:$0xff] %v1980
      %1997 = vst [vmem:[%s210 + $0x38] sm:$0xff] %v1981
      %1998 = vst [vmem:[%s210 + $0x40] sm:$0xff] %v1982
      %1999 = vst [vmem:[%s210 + $0x48] sm:$0xff] %v1983
      %2000 = vst [vmem:[%s210 + $0x50] sm:$0xff] %v1984
      %2001 = vst [vmem:[%s210 + $0x58] sm:$0xff] %v1985
      %2002 = vst [vmem:[%s210 + $0x60] sm:$0xff] %v1986
      %2003 = vst [vmem:[%s210 + $0x68] sm:$0xff] %v1987
      %2004 = vst [vmem:[%s210 + $0x70] sm:$0xff] %v1988
      %2005 = vst [vmem:[%s210 + $0x78] sm:$0xff] %v1989
      %2006 = vmatprep.subr.mxu0 0.0
      %2007 = vmatpush1.msra.mxu0 %v1989
      %2008 = vmatprep.subr.mxu0 0.0
      %2009 = vmatpush1.msra.mxu0 %v1988
      %2010 = vmatprep.subr.mxu0 0.0
      %2011 = vmatpush1.msra.mxu0 %v1987
      %2012 = vmatprep.subr.mxu0 0.0
      %2013 = vmatpush1.msra.mxu0 %v1986
      %2014 = vmatprep.subr.mxu0 0.0
      %2015 = vmatpush1.msra.mxu0 %v1985
      %2016 = vmatprep.subr.mxu0 0.0
      %2017 = vmatpush1.msra.mxu0 %v1984
      %2018 = vmatprep.subr.mxu0 0.0
      %2019 = vmatpush1.msra.mxu0 %v1983
      %2020 = vmatprep.subr.mxu0 0.0
      %2021 = vmatpush1.msra.mxu0 %v1982
      %2022 = vmatprep.subr.mxu0 0.0
      %2023 = vmatpush1.msra.mxu0 %v1981
      %2024 = vmatprep.subr.mxu0 0.0
      %2025 = vmatpush1.msra.mxu0 %v1980
      %2026 = vmatprep.subr.mxu0 0.0
      %2027 = vmatpush1.msra.mxu0 %v1979
      %2028 = vmatprep.subr.mxu0 0.0
      %2029 = vmatpush1.msra.mxu0 %v1978
      %2030 = vmatprep.subr.mxu0 0.0
      %2031 = vmatpush1.msra.mxu0 %v1977
      %2032 = vmatprep.subr.mxu0 0.0
      %2033 = vmatpush1.msra.mxu0 %v1976
      %2034 = vmatprep.subr.mxu0 0.0
      %2035 = vmatpush1.msra.mxu0 %v1975
      %2036 = vmatprep.subr.mxu0 0.0
      %2037 = vmatpush1.msra.mxu0 %v1974
      %2038 = vmatprep.subr.mxu0 0.0
      %2039 = vmatpush2.msra.mxu0 0.0
      %2040 = vmatprep.subr.mxu0 0.0
      %2041 = vmatpush2.msra.mxu0 0.0
      %2042 = vmatprep.subr.mxu0 0.0
      %2043 = vmatpush2.msra.mxu0 0.0
      %2044 = vmatprep.subr.mxu0 0.0
      %2045 = vmatpush2.msra.mxu0 0.0
      %2046 = vmatprep.subr.mxu0 0.0
      %2047 = vmatpush2.msra.mxu0 0.0
      %2048 = vmatprep.subr.mxu0 0.0
      %2049 = vmatpush2.msra.mxu0 0.0
      %2050 = vmatprep.subr.mxu0 0.0
      %2051 = vmatpush2.msra.mxu0 0.0
      %2052 = vmatprep.subr.mxu0 0.0
      %2053 = vmatpush2.msra.mxu0 0.0
      %2054 = vmatprep.subr.mxu0 0.0
      %2055 = vmatpush2.msra.mxu0 0.0
      %2056 = vmatprep.subr.mxu0 0.0
      %2057 = vmatpush2.msra.mxu0 0.0
      %2058 = vmatprep.subr.mxu0 0.0
      %2059 = vmatpush2.msra.mxu0 0.0
      %2060 = vmatprep.subr.mxu0 0.0
      %2061 = vmatpush2.msra.mxu0 0.0
      %2062 = vmatprep.subr.mxu0 0.0
      %2063 = vmatpush2.msra.mxu0 0.0
      %2064 = vmatprep.subr.mxu0 0.0
      %2065 = vmatpush2.msra.mxu0 0.0
      %2066 = vmatprep.subr.mxu0 0.0
      %2067 = vmatpush2.msra.mxu0 0.0
      %2068 = vmatprep.subr.mxu0 0.0
      %2069 = vmatpush2.msra.mxu0 0.0
      %2070 = vmatprep.mubr.f32.mxu0 0.0
      %2071 = vmatmul.mubr.f32.gmra.mxu0 1.0
      %v2072 = vpop.f32.mrf.mxu0
      %v2073 = vadd.f32 0.0, %v2072
      %v2074 = vpop.f32.mrf.mxu0
      %2075 = vdwg.mxu0
      %2076 = vst [vmem:[%s214] sm:$0xff] %v2073
      %v2077 = vmul.f32 %v1974, %v1974
      %v2078 = vmul.f32 %v1975, %v1975
      %v2079 = vmul.f32 %v1976, %v1976
      %v2080 = vmul.f32 %v1977, %v1977
      %v2081 = vmul.f32 %v1978, %v1978
      %v2082 = vmul.f32 %v1979, %v1979
      %v2083 = vmul.f32 %v1980, %v1980
      %v2084 = vmul.f32 %v1981, %v1981
      %v2085 = vmul.f32 %v1982, %v1982
      %v2086 = vmul.f32 %v1983, %v1983
      %v2087 = vmul.f32 %v1984, %v1984
      %v2088 = vmul.f32 %v1985, %v1985
      %v2089 = vmul.f32 %v1986, %v1986
      %v2090 = vmul.f32 %v1987, %v1987
      %v2091 = vmul.f32 %v1988, %v1988
      %v2092 = vmul.f32 %v1989, %v1989
      %2093 = vmatprep.subr.mxu0 0.0
      %2094 = vmatpush1.msra.mxu0 %v2092
      %2095 = vmatprep.subr.mxu0 0.0
      %2096 = vmatpush1.msra.mxu0 %v2091
      %2097 = vmatprep.subr.mxu0 0.0
      %2098 = vmatpush1.msra.mxu0 %v2090
      %2099 = vmatprep.subr.mxu0 0.0
      %2100 = vmatpush1.msra.mxu0 %v2089
      %2101 = vmatprep.subr.mxu0 0.0
      %2102 = vmatpush1.msra.mxu0 %v2088
      %2103 = vmatprep.subr.mxu0 0.0
      %2104 = vmatpush1.msra.mxu0 %v2087
      %2105 = vmatprep.subr.mxu0 0.0
      %2106 = vmatpush1.msra.mxu0 %v2086
      %2107 = vmatprep.subr.mxu0 0.0
      %2108 = vmatpush1.msra.mxu0 %v2085
      %2109 = vmatprep.subr.mxu0 0.0
      %2110 = vmatpush1.msra.mxu0 %v2084
      %2111 = vmatprep.subr.mxu0 0.0
      %2112 = vmatpush1.msra.mxu0 %v2083
      %2113 = vmatprep.subr.mxu0 0.0
      %2114 = vmatpush1.msra.mxu0 %v2082
      %2115 = vmatprep.subr.mxu0 0.0
      %2116 = vmatpush1.msra.mxu0 %v2081
      %2117 = vmatprep.subr.mxu0 0.0
      %2118 = vmatpush1.msra.mxu0 %v2080
      %2119 = vmatprep.subr.mxu0 0.0
      %2120 = vmatpush1.msra.mxu0 %v2079
      %2121 = vmatprep.subr.mxu0 0.0
      %2122 = vmatpush1.msra.mxu0 %v2078
      %2123 = vmatprep.subr.mxu0 0.0
      %2124 = vmatpush1.msra.mxu0 %v2077
      %2125 = vmatprep.subr.mxu0 0.0
      %2126 = vmatpush2.msra.mxu0 0.0
      %2127 = vmatprep.subr.mxu0 0.0
      %2128 = vmatpush2.msra.mxu0 0.0
      %2129 = vmatprep.subr.mxu0 0.0
      %2130 = vmatpush2.msra.mxu0 0.0
      %2131 = vmatprep.subr.mxu0 0.0
      %2132 = vmatpush2.msra.mxu0 0.0
      %2133 = vmatprep.subr.mxu0 0.0
      %2134 = vmatpush2.msra.mxu0 0.0
      %2135 = vmatprep.subr.mxu0 0.0
      %2136 = vmatpush2.msra.mxu0 0.0
      %2137 = vmatprep.subr.mxu0 0.0
      %2138 = vmatpush2.msra.mxu0 0.0
      %2139 = vmatprep.subr.mxu0 0.0
      %2140 = vmatpush2.msra.mxu0 0.0
      %2141 = vmatprep.subr.mxu0 0.0
      %2142 = vmatpush2.msra.mxu0 0.0
      %2143 = vmatprep.subr.mxu0 0.0
      %2144 = vmatpush2.msra.mxu0 0.0
      %2145 = vmatprep.subr.mxu0 0.0
      %2146 = vmatpush2.msra.mxu0 0.0
      %2147 = vmatprep.subr.mxu0 0.0
      %2148 = vmatpush2.msra.mxu0 0.0
      %2149 = vmatprep.subr.mxu0 0.0
      %2150 = vmatpush2.msra.mxu0 0.0
      %2151 = vmatprep.subr.mxu0 0.0
      %2152 = vmatpush2.msra.mxu0 0.0
      %2153 = vmatprep.subr.mxu0 0.0
      %2154 = vmatpush2.msra.mxu0 0.0
      %2155 = vmatprep.subr.mxu0 0.0
      %2156 = vmatpush2.msra.mxu0 0.0
      %2157 = vmatprep.mubr.f32.mxu0 0.0
      %2158 = vmatmul.mubr.f32.gmra.mxu0 1.0
      %v2159 = vpop.f32.mrf.mxu0
      %v2160 = vadd.f32 0.0, %v2159
      %v2161 = vpop.f32.mrf.mxu0
      %2162 = vdwg.mxu0
      %2163 = vst [vmem:[%s218] sm:$0xff] %v2160
      %p2164 = scmp.lt.s32.totalorder %s16, 3
      %s2165 = scalar_select %p2164, %s16, 3
      %s2166 = smul.addr %s2165, 16
      %s2167 = smul.addr %s2166, 8
      %s2168 = scalar_lea.vmem %s2, %s2167
      %p2169 = scmp.lt.s32.totalorder %s16, 3
      %s2170 = scalar_select %p2169, %s16, 3
      %s2171 = smul.addr %s2170, 8
      %s2172 = scalar_lea.vmem %s3, %s2171
      %p2173 = scmp.lt.s32.totalorder %s16, 3
      %s2174 = scalar_select %p2173, %s16, 3
      %s2175 = smul.addr %s2174, 8
      %s2176 = scalar_lea.vmem %s4, %s2175
      // Predicated region
      $region29: #{unet_conv2_forward.4} parent=27 // pred_check
        %p2177 = pneg %p81
      $region30: #{unet_conv2_forward.4} parent=27 // pred_check_branch
        %2179 = sbr.rel (%p2177) target = $region32
      $region31: #{unet_conv2_forward.4} parent=27 // pred_region
        _
      $region32: #{unet_conv2_forward.4} parent=27 // pred_fallthru
        _
      // Predicated region
      $region33: #{unet_conv2_forward.4} parent=27 // pred_check
        %p2180 = pneg %p107
      $region34: #{unet_conv2_forward.4} parent=27 // pred_check_branch
        %2182 = sbr.rel (%p2180) target = $region36
      $region35: #{unet_conv2_forward.4} parent=27 // pred_region
        _
      $region36: #{unet_conv2_forward.4} parent=27 // pred_fallthru
        _
      // Predicated region
      $region37: #{unet_conv2_forward.4} parent=27 // pred_check
        %p2183 = pneg %p133
      $region38: #{unet_conv2_forward.4} parent=27 // pred_check_branch
        %2185 = sbr.rel (%p2183) target = $region40
      $region39: #{unet_conv2_forward.4} parent=27 // pred_region
        _
      $region40: #{unet_conv2_forward.4} parent=27 // pred_fallthru
        _
    $region28: #{unet_conv2_forward.4} parent=5 // pred_fallthru
      _
    %p2186 = scmp.le.s32.totalorder 2, %s11
    // Predicated region
    $region41: #{unet_conv2_forward.4} parent=5 // pred_check
      %p2187 = pneg %p2186
    $region42: #{unet_conv2_forward.4} parent=5 // pred_check_branch
      %2189 = sbr.rel (%p2187) target = $region44
    $region43: #{unet_conv2_forward.4} parent=5 // pred_region
      %s2190 = ssub.s32 %s11, 2
      // Predicated region
      $region45: #{unet_conv2_forward.4} parent=43 // pred_check
        %p2191 = pneg %p87
      $region46: #{unet_conv2_forward.4} parent=43 // pred_check_branch
        %2193 = sbr.rel (%p2191) target = $region48
      $region47: #{unet_conv2_forward.4} parent=43 // pred_region
        %p2194 = scmp.lt.s32.totalorder %s17, 3
        %s2195 = scalar_select %p2194, %s17, 3
        %s2196 = smul.addr %s2195, 16
        %s2197 = smul.addr %s2196, 8
        %s2198 = scalar_lea.vmem %s2, %s2197
      $region48: #{unet_conv2_forward.4} parent=43 // pred_fallthru
        _
      // Predicated region
      $region49: #{unet_conv2_forward.4} parent=43 // pred_check
        %p2199 = pneg %p113
      $region50: #{unet_conv2_forward.4} parent=43 // pred_check_branch
        %2201 = sbr.rel (%p2199) target = $region52
      $region51: #{unet_conv2_forward.4} parent=43 // pred_region
        %p2202 = scmp.lt.s32.totalorder %s17, 3
        %s2203 = scalar_select %p2202, %s17, 3
        %s2204 = smul.addr %s2203, 8
        %s2205 = scalar_lea.vmem %s3, %s2204
      $region52: #{unet_conv2_forward.4} parent=43 // pred_fallthru
        _
      // Predicated region
      $region53: #{unet_conv2_forward.4} parent=43 // pred_check
        %p2206 = pneg %p139
      $region54: #{unet_conv2_forward.4} parent=43 // pred_check_branch
        %2208 = sbr.rel (%p2206) target = $region56
      $region55: #{unet_conv2_forward.4} parent=43 // pred_region
        %p2209 = scmp.lt.s32.totalorder %s17, 3
        %s2210 = scalar_select %p2209, %s17, 3
        %s2211 = smul.addr %s2210, 8
        %s2212 = scalar_lea.vmem %s4, %s2211
      $region56: #{unet_conv2_forward.4} parent=43 // pred_fallthru
        _
    $region44: #{unet_conv2_forward.4} parent=5 // pred_fallthru
      _
  $region6: #{unet_conv2_forward.4} parent=0 // loop_footer
    %s15 = sadd.s32 1, %s11
  $region7: #{unet_conv2_forward.4} parent=0 // loop_footer_branch
    %10 = sbr.rel target = $region3
  $region8: #{unet_conv2_forward.4} parent=0 // loop_exit
    _

</llo_original>
